<compile_context>
chip_gen: v7x
topology: tpu7x:2x2x1
jax: 0.10.0
libtpu: 0.0.40
codegen_flags: <defaults>
</compile_context>

<pallas_src>
import functools

import jax
import jax.numpy as jnp
from jax import lax
from jax.experimental import pallas as pl
from jax.experimental.pallas import tpu as pltpu

BN_EPS = 1e-5
LANES = 128


def _round_up(n, m):
    return ((n + m - 1) // m) * m


def product_encoder_kernel(p_ref, d_ref, xo_ref, premul_ref, w_ref, vec_ref, o_ref,
                           *, dept_row_offset, layer_dims):
    """Fused: [one-hot gather + concat + fc1] -> BN -> ReLU -> fc2 -> BN -> ReLU
    -> fc3 -> BN -> ReLU.

    Activations are (B, 128) lane-dense; lanes past each layer's true width are
    exactly zero (zero-padded weight lanes / bias / gamma / beta keep them zero
    through BN and ReLU), and are sliced down to the true contraction width
    before each dot and before the final store.
    """
    batch = xo_ref.shape[0]
    n_rows = premul_ref.shape[0]          # product rows + dept rows (8-aligned)
    n_other = xo_ref.shape[1]             # x_other width, pre-padded to 16
    d1, d2, d3 = layer_dims               # 48, 32, 16

    def bn_relu(y, vecs):
        b, g, be = vecs[0:1, :], vecs[1:2, :], vecs[2:3, :]
        y = y + b
        mean = jnp.mean(y, axis=0, keepdims=True)
        dlt = y - mean
        var = jnp.mean(dlt * dlt, axis=0, keepdims=True)   # two-pass (matches ref)
        return jnp.maximum(dlt * lax.rsqrt(var + BN_EPS) * g + be, 0.0)

    # --- fused embedding gather + concat + fc1 ------------------------------
    # premul_ref holds [emb_product | emb_dept] @ W1[:emb_width] (precomputed
    # offline), so selecting the product row and the dept row and summing them
    # IS the embedding contribution to layer 1.  Exact one-hot matmul on MXU.
    row_iota = lax.broadcasted_iota(jnp.int32, (batch, n_rows), 1)
    onehot = jnp.logical_or(
        row_iota == p_ref[...],                          # product row
        row_iota == (d_ref[...] + dept_row_offset),      # dept row (disjoint range)
    ).astype(jnp.float32)                                # (B, n_rows)

    y = jnp.dot(onehot, premul_ref[...],
                precision=lax.Precision.HIGHEST,
                preferred_element_type=jnp.float32)      # (B, 128), lanes >= d1 are 0
    w1_other = w_ref[d1 + d2:d1 + d2 + n_other, :]       # (16, 128) aligned ref slice
    y = y + jnp.dot(xo_ref[...], w1_other,
                    precision=lax.Precision.HIGHEST,
                    preferred_element_type=jnp.float32)
    h = bn_relu(y, vec_ref[0])

    # --- layer 2: fc2 + BN + ReLU -------------------------------------------
    y = jnp.dot(h[:, 0:d1], w_ref[0:d1, :],
                precision=lax.Precision.HIGHEST,
                preferred_element_type=jnp.float32)
    h = bn_relu(y, vec_ref[1])

    # --- layer 3: fc3 + BN + ReLU -------------------------------------------
    y = jnp.dot(h[:, 0:d2], w_ref[d1:d1 + d2, :],
                precision=lax.Precision.HIGHEST,
                preferred_element_type=jnp.float32)
    h = bn_relu(y, vec_ref[2])

    o_ref[...] = h[:, 0:d3].astype(o_ref.dtype)


def pack_params(params, input_size, product_emb_dim, dept_emb_dim):
    """One-time offline packing of module params into compact VMEM slabs."""
    num_product = params["emb_product"].shape[0]
    num_dept = params["emb_dept"].shape[0]
    p_rows = _round_up(num_product, 8)
    d_rows = _round_up(num_dept, 8)
    emb_width = product_emb_dim + dept_emb_dim
    d1 = params["w1"].shape[1]
    d2 = params["w2"].shape[1]
    d3 = params["w3"].shape[1]
    n_other_pad = _round_up(input_size, 8)

    # Combined embedding table (product rows, then dept rows at a disjoint row
    # range), true width, then fold W1's embedding rows in offline.
    table = jnp.zeros((p_rows + d_rows, emb_width), jnp.float32)
    table = table.at[:num_product, :product_emb_dim].set(params["emb_product"])
    table = table.at[p_rows:p_rows + num_dept, product_emb_dim:].set(params["emb_dept"])
    premul = jnp.dot(table, params["w1"][:emb_width, :],
                     precision=lax.Precision.HIGHEST)            # (rows, d1)
    premul_slab = jnp.zeros((p_rows + d_rows, LANES), jnp.float32)
    premul_slab = premul_slab.at[:, :d1].set(premul)

    # Compact weight slab (row dim NOT padded to 128):
    #   rows [0, d1)                -> W2      (48 x 32, lane-padded)
    #   rows [d1, d1+d2)            -> W3      (32 x 16, lane-padded)
    #   rows [d1+d2, d1+d2+16)      -> W1 rows for x_other (10 x 48, padded)
    w_slab = jnp.zeros((d1 + d2 + n_other_pad, LANES), jnp.float32)
    w_slab = w_slab.at[:d1, :d2].set(params["w2"])
    w_slab = w_slab.at[d1:d1 + d2, :d3].set(params["w3"])
    w_slab = w_slab.at[d1 + d2:d1 + d2 + input_size, :d1].set(
        params["w1"][emb_width:emb_width + input_size, :])

    # Per-layer rows (bias, gamma, beta), zero-padded to 128 lanes so padded
    # lanes provably stay exactly 0 through BN + ReLU.
    vec_slab = jnp.zeros((3, 3, LANES), jnp.float32)
    for i, d in enumerate((d1, d2, d3), start=1):
        vec_slab = vec_slab.at[i - 1, 0, :d].set(params[f"b{i}"].reshape(d))
        vec_slab = vec_slab.at[i - 1, 1, :d].set(params[f"g{i}"].reshape(d))
        vec_slab = vec_slab.at[i - 1, 2, :d].set(params[f"be{i}"].reshape(d))

    return {
        "premul_slab": premul_slab,
        "w_slab": w_slab,
        "vec_slab": vec_slab,
        "dept_row_offset": int(p_rows),
        "layer_dims": (int(d1), int(d2), int(d3)),
        "n_other_pad": int(n_other_pad),
        "out_dim": int(d3),
    }


def product_encoder_forward(x_product, x_dept, x_other, packed):
    """Full forward.  Per-call glue is only two (B,1) reshapes and one tiny pad."""
    batch = x_other.shape[0]
    out_dim = packed["out_dim"]
    n_other_pad = packed["n_other_pad"]

    p_idx = x_product.astype(jnp.int32).reshape(batch, 1)
    d_idx = x_dept.astype(jnp.int32).reshape(batch, 1)
    xo = jnp.pad(x_other.astype(jnp.float32),
                 ((0, 0), (0, n_other_pad - x_other.shape[1])))

    kernel = functools.partial(product_encoder_kernel,
                               dept_row_offset=packed["dept_row_offset"],
                               layer_dims=packed["layer_dims"])

    vmem = pl.BlockSpec(memory_space=pltpu.MemorySpace.VMEM)
    return pl.pallas_call(
        kernel,
        out_shape=jax.ShapeDtypeStruct((batch, out_dim), jnp.float32),
        in_specs=[vmem] * 6,
        out_specs=vmem,
        # single VMEM-resident block: no grid, no pipelining on purpose.
        compiler_params=pltpu.CompilerParams(vmem_limit_bytes=32 * 1024 * 1024),
    )(p_idx, d_idx, xo, packed["premul_slab"], packed["w_slab"], packed["vec_slab"])


def init_params(key, input_size, num_product, num_dept, product_emb_dim, dept_emb_dim):
    """Deterministic synthetic parameter init matching the module's shapes."""
    d_in = input_size + product_emb_dim + dept_emb_dim
    dims = [(d_in, 48), (48, 32), (32, 16)]
    keys = jax.random.split(key, 2 + 4 * len(dims))
    params = {
        "emb_product": jax.random.normal(keys[0], (num_product, product_emb_dim), jnp.float32),
        "emb_dept": jax.random.normal(keys[1], (num_dept, dept_emb_dim), jnp.float32),
    }
    k = 2
    for i, (din, dout) in enumerate(dims, start=1):
        scale = 1.0 / jnp.sqrt(jnp.float32(din))
        params[f"w{i}"] = jax.random.uniform(keys[k], (din, dout), jnp.float32, -scale, scale)
        params[f"b{i}"] = jax.random.uniform(keys[k + 1], (1, dout), jnp.float32, -scale, scale)
        # BatchNorm affine params (PyTorch default is gamma=1, beta=0; use
        # nontrivial deterministic values so the affine path is exercised).
        params[f"g{i}"] = 1.0 + 0.1 * jax.random.normal(keys[k + 2], (1, dout), jnp.float32)
        params[f"be{i}"] = 0.1 * jax.random.normal(keys[k + 3], (1, dout), jnp.float32)
        k += 4
    return params


def reference_forward(x_product, x_dept, x_other, params):
    """Pure-JAX reference mirroring the PyTorch forward (training-mode BN)."""
    e_p = jnp.take(params["emb_product"], x_product, axis=0)
    e_d = jnp.take(params["emb_dept"], x_dept, axis=0)
    h = jnp.concatenate([e_p, e_d, x_other], axis=1)
    for i in (1, 2, 3):
        y = h @ params[f"w{i}"] + params[f"b{i}"]
        mean = jnp.mean(y, axis=0, keepdims=True)
        var = jnp.mean((y - mean) ** 2, axis=0, keepdims=True)
        y = (y - mean) / jnp.sqrt(var + BN_EPS)
        y = y * params[f"g{i}"] + params[f"be{i}"]
        h = jnp.maximum(y, 0.0)
    return h


if __name__ == "__main__":
    # Small shapes consistent with the module's forward.
    batch = 8
    input_size = 10          # x_other feature width
    num_product = 50
    num_dept = 20
    product_emb_dim = 8
    dept_emb_dim = 6

    key = jax.random.PRNGKey(0)
    k_params, k_prod, k_dept, k_other = jax.random.split(key, 4)

    params = init_params(k_params, input_size, num_product, num_dept,
                         product_emb_dim, dept_emb_dim)
    packed = pack_params(params, input_size, product_emb_dim, dept_emb_dim)

    x_product = jax.random.randint(k_prod, (batch,), 0, num_product, dtype=jnp.int32)
    x_dept = jax.random.randint(k_dept, (batch,), 0, num_dept, dtype=jnp.int32)
    x_other = jax.random.normal(k_other, (batch, input_size), jnp.float32)

    out = product_encoder_forward(x_product, x_dept, x_other, packed)
    out = jax.block_until_ready(out)

    ref = reference_forward(x_product, x_dept, x_other, params)
    assert out.shape == (batch, 16)
    assert jnp.allclose(out, ref, atol=1e-4, rtol=1e-4), "mismatch vs reference"

    print("KERNEL_OK")
</pallas_src>

<mosaic_0001>
module attributes {stable_mosaic.version = 11 : i64} {
  func.func @product_encoder_kernel(%arg0: memref<8x1xi32, #tpu.memory_space<vmem>>, %arg1: memref<8x1xi32, #tpu.memory_space<vmem>>, %arg2: memref<8x16xf32, #tpu.memory_space<vmem>>, %arg3: memref<80x128xf32, #tpu.memory_space<vmem>>, %arg4: memref<96x128xf32, #tpu.memory_space<vmem>>, %arg5: memref<3x3x128xf32, #tpu.memory_space<vmem>>, %arg6: memref<8x16xf32, #tpu.memory_space<vmem>>) attributes {dimension_semantics = [], scalar_prefetch = 0 : i64, scratch_operands = 0 : i64, tpu.core_type = #tpu.core_type<tc>} {
    %0 = tpu.iota {dimensions = array<i32: 1>} : vector<8x80xi32>
    %c0 = arith.constant 0 : index
    %c0_0 = arith.constant 0 : index
    %1 = vector.load %arg0[%c0, %c0_0] : memref<8x1xi32, #tpu.memory_space<vmem>>, vector<8x1xi32>
    %2 = vector.broadcast %1 : vector<8x1xi32> to vector<8x80xi32>
    %3 = arith.cmpi eq, %0, %2 : vector<8x80xi32>
    %c0_1 = arith.constant 0 : index
    %c0_2 = arith.constant 0 : index
    %4 = vector.load %arg1[%c0_1, %c0_2] : memref<8x1xi32, #tpu.memory_space<vmem>>, vector<8x1xi32>
    %c56_i32 = arith.constant 56 : i32
    %5 = vector.broadcast %c56_i32 : i32 to vector<8x1xi32>
    %6 = arith.addi %4, %5 : vector<8x1xi32>
    %7 = vector.broadcast %6 : vector<8x1xi32> to vector<8x80xi32>
    %8 = arith.cmpi eq, %0, %7 : vector<8x80xi32>
    %9 = arith.ori %3, %8 : vector<8x80xi1>
    %10 = arith.extui %9 : vector<8x80xi1> to vector<8x80xi32>
    %11 = arith.sitofp %10 : vector<8x80xi32> to vector<8x80xf32>
    %c0_3 = arith.constant 0 : index
    %c0_4 = arith.constant 0 : index
    %12 = vector.load %arg3[%c0_3, %c0_4] : memref<80x128xf32, #tpu.memory_space<vmem>>, vector<80x128xf32>
    %cst = arith.constant dense<0.000000e+00> : vector<8x128xf32>
    %13 = tpu.matmul %11, %12, %cst {dimension_numbers = #tpu.dot_dimension_numbers<[1], [0], [0], [1], [0, 0, 1, 1], [], []>, precision = #tpu.contract_precision<fp32>} : vector<8x80xf32>, vector<80x128xf32>, vector<8x128xf32> -> vector<8x128xf32>
    %c80 = arith.constant 80 : index
    %c0_5 = arith.constant 0 : index
    %14 = vector.load %arg4[%c80, %c0_5] : memref<96x128xf32, #tpu.memory_space<vmem>>, vector<16x128xf32>
    %c0_6 = arith.constant 0 : index
    %c0_7 = arith.constant 0 : index
    %15 = vector.load %arg2[%c0_6, %c0_7] : memref<8x16xf32, #tpu.memory_space<vmem>>, vector<8x16xf32>
    %cst_8 = arith.constant dense<0.000000e+00> : vector<8x128xf32>
    %16 = tpu.matmul %15, %14, %cst_8 {dimension_numbers = #tpu.dot_dimension_numbers<[1], [0], [0], [1], [0, 0, 1, 1], [], []>, precision = #tpu.contract_precision<fp32>} : vector<8x16xf32>, vector<16x128xf32>, vector<8x128xf32> -> vector<8x128xf32>
    %17 = arith.addf %13, %16 : vector<8x128xf32>
    %c0_9 = arith.constant 0 : index
    %c0_10 = arith.constant 0 : index
    %c0_11 = arith.constant 0 : index
    %18 = vector.load %arg5[%c0_9, %c0_10, %c0_11] : memref<3x3x128xf32, #tpu.memory_space<vmem>>, vector<1x3x128xf32>
    %19 = vector.shape_cast %18 : vector<1x3x128xf32> to vector<3x128xf32>
    %20 = vector.extract_strided_slice %19 {offsets = [0, 0], sizes = [1, 128], strides = [1, 1]} : vector<3x128xf32> to vector<1x128xf32>
    %21 = vector.extract_strided_slice %19 {offsets = [1, 0], sizes = [1, 128], strides = [1, 1]} : vector<3x128xf32> to vector<1x128xf32>
    %22 = vector.extract_strided_slice %19 {offsets = [2, 0], sizes = [1, 128], strides = [1, 1]} : vector<3x128xf32> to vector<1x128xf32>
    %23 = vector.broadcast %20 : vector<1x128xf32> to vector<8x128xf32>
    %24 = arith.addf %17, %23 : vector<8x128xf32>
    %cst_12 = arith.constant dense<0.000000e+00> : vector<128xf32>
    %25 = vector.multi_reduction <add>, %24, %cst_12 [0] : vector<8x128xf32> to vector<128xf32>
    %26 = vector.shape_cast %25 : vector<128xf32> to vector<1x128xf32>
    %cst_13 = arith.constant 8.000000e+00 : f32
    %27 = vector.broadcast %cst_13 : f32 to vector<1x128xf32>
    %28 = arith.divf %26, %27 : vector<1x128xf32>
    %29 = vector.broadcast %28 : vector<1x128xf32> to vector<8x128xf32>
    %30 = arith.subf %24, %29 : vector<8x128xf32>
    %31 = arith.mulf %30, %30 : vector<8x128xf32>
    %cst_14 = arith.constant dense<0.000000e+00> : vector<128xf32>
    %32 = vector.multi_reduction <add>, %31, %cst_14 [0] : vector<8x128xf32> to vector<128xf32>
    %33 = vector.shape_cast %32 : vector<128xf32> to vector<1x128xf32>
    %cst_15 = arith.constant 8.000000e+00 : f32
    %34 = vector.broadcast %cst_15 : f32 to vector<1x128xf32>
    %35 = arith.divf %33, %34 : vector<1x128xf32>
    %cst_16 = arith.constant 9.99999974E-6 : f32
    %36 = vector.broadcast %cst_16 : f32 to vector<1x128xf32>
    %37 = arith.addf %35, %36 : vector<1x128xf32>
    %38 = math.rsqrt %37 : vector<1x128xf32>
    %39 = vector.broadcast %38 : vector<1x128xf32> to vector<8x128xf32>
    %40 = arith.mulf %30, %39 : vector<8x128xf32>
    %41 = vector.broadcast %21 : vector<1x128xf32> to vector<8x128xf32>
    %42 = arith.mulf %40, %41 : vector<8x128xf32>
    %43 = vector.broadcast %22 : vector<1x128xf32> to vector<8x128xf32>
    %44 = arith.addf %42, %43 : vector<8x128xf32>
    %cst_17 = arith.constant 0.000000e+00 : f32
    %45 = vector.broadcast %cst_17 : f32 to vector<8x128xf32>
    %46 = arith.maximumf %44, %45 : vector<8x128xf32>
    %47 = vector.extract_strided_slice %46 {offsets = [0, 0], sizes = [8, 48], strides = [1, 1]} : vector<8x128xf32> to vector<8x48xf32>
    %c0_18 = arith.constant 0 : index
    %c0_19 = arith.constant 0 : index
    %48 = vector.load %arg4[%c0_18, %c0_19] : memref<96x128xf32, #tpu.memory_space<vmem>>, vector<48x128xf32>
    %cst_20 = arith.constant dense<0.000000e+00> : vector<8x128xf32>
    %49 = tpu.matmul %47, %48, %cst_20 {dimension_numbers = #tpu.dot_dimension_numbers<[1], [0], [0], [1], [0, 0, 1, 1], [], []>, precision = #tpu.contract_precision<fp32>} : vector<8x48xf32>, vector<48x128xf32>, vector<8x128xf32> -> vector<8x128xf32>
    %c1 = arith.constant 1 : index
    %c0_21 = arith.constant 0 : index
    %c0_22 = arith.constant 0 : index
    %50 = vector.load %arg5[%c1, %c0_21, %c0_22] : memref<3x3x128xf32, #tpu.memory_space<vmem>>, vector<1x3x128xf32>
    %51 = vector.shape_cast %50 : vector<1x3x128xf32> to vector<3x128xf32>
    %52 = vector.extract_strided_slice %51 {offsets = [0, 0], sizes = [1, 128], strides = [1, 1]} : vector<3x128xf32> to vector<1x128xf32>
    %53 = vector.extract_strided_slice %51 {offsets = [1, 0], sizes = [1, 128], strides = [1, 1]} : vector<3x128xf32> to vector<1x128xf32>
    %54 = vector.extract_strided_slice %51 {offsets = [2, 0], sizes = [1, 128], strides = [1, 1]} : vector<3x128xf32> to vector<1x128xf32>
    %55 = vector.broadcast %52 : vector<1x128xf32> to vector<8x128xf32>
    %56 = arith.addf %49, %55 : vector<8x128xf32>
    %cst_23 = arith.constant dense<0.000000e+00> : vector<128xf32>
    %57 = vector.multi_reduction <add>, %56, %cst_23 [0] : vector<8x128xf32> to vector<128xf32>
    %58 = vector.shape_cast %57 : vector<128xf32> to vector<1x128xf32>
    %cst_24 = arith.constant 8.000000e+00 : f32
    %59 = vector.broadcast %cst_24 : f32 to vector<1x128xf32>
    %60 = arith.divf %58, %59 : vector<1x128xf32>
    %61 = vector.broadcast %60 : vector<1x128xf32> to vector<8x128xf32>
    %62 = arith.subf %56, %61 : vector<8x128xf32>
    %63 = arith.mulf %62, %62 : vector<8x128xf32>
    %cst_25 = arith.constant dense<0.000000e+00> : vector<128xf32>
    %64 = vector.multi_reduction <add>, %63, %cst_25 [0] : vector<8x128xf32> to vector<128xf32>
    %65 = vector.shape_cast %64 : vector<128xf32> to vector<1x128xf32>
    %cst_26 = arith.constant 8.000000e+00 : f32
    %66 = vector.broadcast %cst_26 : f32 to vector<1x128xf32>
    %67 = arith.divf %65, %66 : vector<1x128xf32>
    %cst_27 = arith.constant 9.99999974E-6 : f32
    %68 = vector.broadcast %cst_27 : f32 to vector<1x128xf32>
    %69 = arith.addf %67, %68 : vector<1x128xf32>
    %70 = math.rsqrt %69 : vector<1x128xf32>
    %71 = vector.broadcast %70 : vector<1x128xf32> to vector<8x128xf32>
    %72 = arith.mulf %62, %71 : vector<8x128xf32>
    %73 = vector.broadcast %53 : vector<1x128xf32> to vector<8x128xf32>
    %74 = arith.mulf %72, %73 : vector<8x128xf32>
    %75 = vector.broadcast %54 : vector<1x128xf32> to vector<8x128xf32>
    %76 = arith.addf %74, %75 : vector<8x128xf32>
    %cst_28 = arith.constant 0.000000e+00 : f32
    %77 = vector.broadcast %cst_28 : f32 to vector<8x128xf32>
    %78 = arith.maximumf %76, %77 : vector<8x128xf32>
    %79 = vector.extract_strided_slice %78 {offsets = [0, 0], sizes = [8, 32], strides = [1, 1]} : vector<8x128xf32> to vector<8x32xf32>
    %c48 = arith.constant 48 : index
    %c0_29 = arith.constant 0 : index
    %80 = vector.load %arg4[%c48, %c0_29] : memref<96x128xf32, #tpu.memory_space<vmem>>, vector<32x128xf32>
    %cst_30 = arith.constant dense<0.000000e+00> : vector<8x128xf32>
    %81 = tpu.matmul %79, %80, %cst_30 {dimension_numbers = #tpu.dot_dimension_numbers<[1], [0], [0], [1], [0, 0, 1, 1], [], []>, precision = #tpu.contract_precision<fp32>} : vector<8x32xf32>, vector<32x128xf32>, vector<8x128xf32> -> vector<8x128xf32>
    %c2 = arith.constant 2 : index
    %c0_31 = arith.constant 0 : index
    %c0_32 = arith.constant 0 : index
    %82 = vector.load %arg5[%c2, %c0_31, %c0_32] : memref<3x3x128xf32, #tpu.memory_space<vmem>>, vector<1x3x128xf32>
    %83 = vector.shape_cast %82 : vector<1x3x128xf32> to vector<3x128xf32>
    %84 = vector.extract_strided_slice %83 {offsets = [0, 0], sizes = [1, 128], strides = [1, 1]} : vector<3x128xf32> to vector<1x128xf32>
    %85 = vector.extract_strided_slice %83 {offsets = [1, 0], sizes = [1, 128], strides = [1, 1]} : vector<3x128xf32> to vector<1x128xf32>
    %86 = vector.extract_strided_slice %83 {offsets = [2, 0], sizes = [1, 128], strides = [1, 1]} : vector<3x128xf32> to vector<1x128xf32>
    %87 = vector.broadcast %84 : vector<1x128xf32> to vector<8x128xf32>
    %88 = arith.addf %81, %87 : vector<8x128xf32>
    %cst_33 = arith.constant dense<0.000000e+00> : vector<128xf32>
    %89 = vector.multi_reduction <add>, %88, %cst_33 [0] : vector<8x128xf32> to vector<128xf32>
    %90 = vector.shape_cast %89 : vector<128xf32> to vector<1x128xf32>
    %cst_34 = arith.constant 8.000000e+00 : f32
    %91 = vector.broadcast %cst_34 : f32 to vector<1x128xf32>
    %92 = arith.divf %90, %91 : vector<1x128xf32>
    %93 = vector.broadcast %92 : vector<1x128xf32> to vector<8x128xf32>
    %94 = arith.subf %88, %93 : vector<8x128xf32>
    %95 = arith.mulf %94, %94 : vector<8x128xf32>
    %cst_35 = arith.constant dense<0.000000e+00> : vector<128xf32>
    %96 = vector.multi_reduction <add>, %95, %cst_35 [0] : vector<8x128xf32> to vector<128xf32>
    %97 = vector.shape_cast %96 : vector<128xf32> to vector<1x128xf32>
    %cst_36 = arith.constant 8.000000e+00 : f32
    %98 = vector.broadcast %cst_36 : f32 to vector<1x128xf32>
    %99 = arith.divf %97, %98 : vector<1x128xf32>
    %cst_37 = arith.constant 9.99999974E-6 : f32
    %100 = vector.broadcast %cst_37 : f32 to vector<1x128xf32>
    %101 = arith.addf %99, %100 : vector<1x128xf32>
    %102 = math.rsqrt %101 : vector<1x128xf32>
    %103 = vector.broadcast %102 : vector<1x128xf32> to vector<8x128xf32>
    %104 = arith.mulf %94, %103 : vector<8x128xf32>
    %105 = vector.broadcast %85 : vector<1x128xf32> to vector<8x128xf32>
    %106 = arith.mulf %104, %105 : vector<8x128xf32>
    %107 = vector.broadcast %86 : vector<1x128xf32> to vector<8x128xf32>
    %108 = arith.addf %106, %107 : vector<8x128xf32>
    %cst_38 = arith.constant 0.000000e+00 : f32
    %109 = vector.broadcast %cst_38 : f32 to vector<8x128xf32>
    %110 = arith.maximumf %108, %109 : vector<8x128xf32>
    %111 = vector.extract_strided_slice %110 {offsets = [0, 0], sizes = [8, 16], strides = [1, 1]} : vector<8x128xf32> to vector<8x16xf32>
    %c0_39 = arith.constant 0 : index
    %c0_40 = arith.constant 0 : index
    %112 = vector.load %arg6[%c0_39, %c0_40] : memref<8x16xf32, #tpu.memory_space<vmem>>, vector<8x16xf32>
    tpu.vector_store %arg6[%c0_39, %c0_40], %111 {strides = array<i32>} : memref<8x16xf32, #tpu.memory_space<vmem>>, vector<8x16xf32>,
    return
  }
}

</mosaic_0001>

<llo_original>
// kernel: tpu_custom_call.1
$region0: #{tpu_custom_call.1}
  #allocation0 [shape = 'u32[]', space=smem, size = 0x4, offset = 0x4, fixed_abs, tag = 'smem constant byte address 0x4 - core index']
  #allocation1 [shape = 'u32[144,128]{1,0:T(1,128)}', space=vmem, size = 0x12000, scoped, tag = 'internal scratch']
  %s0 = inlined_call_operand.vmem [shape: s32[8,1], index: 0, kind: input, shape index: {}]
  %s1 = inlined_call_operand.vmem [shape: s32[8,1], index: 1, kind: input, shape index: {}]
  %s2 = inlined_call_operand.vmem [shape: f32[8,16], index: 2, kind: input, shape index: {}]
  %s3 = inlined_call_operand.hbm [shape: f32[80,128], index: 3, kind: input, shape index: {}]
  %s4 = inlined_call_operand.hbm [shape: f32[96,128], index: 4, kind: input, shape index: {}]
  %s5 = inlined_call_operand.vmem [shape: f32[3,3,128], index: 5, kind: input, shape index: {}]
  %s6 = inlined_call_operand.hbm [shape: f32[8,16], index: 6, kind: output, shape index: {}]
  %s7 = sld [smem:[#allocation0]]
  $region42: #{tpu_custom_call.1} parent=0
    _
  %s9 = ssub.s32 1, %s7
  %s10 = scalar_select 0, %s9, %s7
  $region1: #{tpu_custom_call.1} parent=0
    #allocation2 [shape = 'u8[40960]{0}', space=vmem, size = 0xa000, scoped, tag = 'input window, operand 3, single buffered']
    #allocation3 [shape = 's32[1]{0}', space=sflag, size = 0x4, scoped, tag = 'scoped memory for tpu_custom_call.1']
    #allocation4 [shape = 's32[1]{0}', space=sflag, size = 0x4, scoped, tag = 'scoped memory for tpu_custom_call.1']
    #allocation5 [shape = 'u8[49152]{0}', space=vmem, size = 0xc000, scoped, tag = 'input window, operand 4, single buffered']
    #allocation6 [shape = 's32[1]{0}', space=sflag, size = 0x4, scoped, tag = 'scoped memory for tpu_custom_call.1']
    #allocation7 [shape = 'u8[4096]{0}', space=vmem, size = 0x1000, scoped, tag = 'output window, operand 0, single buffered']
    %11 = vsyncpa [#allocation3], 0
    %12 = vsyncpa [#allocation6], 0
    %13 = vsyncpa [#allocation4], 0
    // Predicated region
    $region2: #{tpu_custom_call.1} parent=1 // pred_check
      _
    $region3: #{tpu_custom_call.1} parent=1 // pred_check_branch
      %15 = sbr.rel (0) target = $region5
    $region4: #{tpu_custom_call.1} parent=1 // pred_region
      _
    $region5: #{tpu_custom_call.1} parent=1 // pred_fallthru
      _
    // Predicated region
    $region6: #{tpu_custom_call.1} parent=1 // pred_check
      _
    $region7: #{tpu_custom_call.1} parent=1 // pred_check_branch
      %17 = sbr.rel (0) target = $region9
    $region8: #{tpu_custom_call.1} parent=1 // pred_region
      _
    $region9: #{tpu_custom_call.1} parent=1 // pred_fallthru
      _
    // Predicated region
    $region10: #{tpu_custom_call.1} parent=1 // pred_check
      _
    $region11: #{tpu_custom_call.1} parent=1 // pred_check_branch
      %19 = sbr.rel (0) target = $region13
    $region12: #{tpu_custom_call.1} parent=1 // pred_region
      _
    $region13: #{tpu_custom_call.1} parent=1 // pred_fallthru
      _
    // Predicated region
    $region14: #{tpu_custom_call.1} parent=1 // pred_check
      _
    $region15: #{tpu_custom_call.1} parent=1 // pred_check_branch
      %21 = sbr.rel (0) target = $region17
    $region16: #{tpu_custom_call.1} parent=1 // pred_region
      %s23 = ssub.s32 1280, 1280
      %24 = vsyncadd [#allocation3], %s23
      %s25 = sshll.u32 [#allocation2], 4
      %s26 = int_to_ptr.vmem [resolvable:$true] %s25
      %31 = dma.hbm_to_vmem [thread:$0]  %s3, 1280, %s26, [#allocation3], 128, 128, 8
    $region17: #{tpu_custom_call.1} parent=1 // pred_fallthru
      _
    // Predicated region
    $region18: #{tpu_custom_call.1} parent=1 // pred_check
      _
    $region19: #{tpu_custom_call.1} parent=1 // pred_check_branch
      %33 = sbr.rel (0) target = $region21
    $region20: #{tpu_custom_call.1} parent=1 // pred_region
      %s35 = ssub.s32 1536, 1536
      %36 = vsyncadd [#allocation6], %s35
      %s37 = sshll.u32 [#allocation5], 4
      %s38 = int_to_ptr.vmem [resolvable:$true] %s37
      %43 = dma.hbm_to_vmem [thread:$0]  %s4, 1536, %s38, [#allocation6], 128, 128, 8
    $region21: #{tpu_custom_call.1} parent=1 // pred_fallthru
      _
    // Predicated region
    $region22: #{tpu_custom_call.1} parent=1 // pred_check
      _
    $region23: #{tpu_custom_call.1} parent=1 // pred_check_branch
      %45 = sbr.rel (0) target = $region25
    $region24: #{tpu_custom_call.1} parent=1 // pred_region
      _
    $region25: #{tpu_custom_call.1} parent=1 // pred_fallthru
      _
    // Predicated region
    $region26: #{tpu_custom_call.1} parent=1 // pred_check
      _
    $region27: #{tpu_custom_call.1} parent=1 // pred_check_branch
      %47 = sbr.rel (0) target = $region29
    $region28: #{tpu_custom_call.1} parent=1 // pred_region
      %48 = dma.done [#allocation3], 1280
    $region29: #{tpu_custom_call.1} parent=1 // pred_fallthru
      _
    // Predicated region
    $region30: #{tpu_custom_call.1} parent=1 // pred_check
      _
    $region31: #{tpu_custom_call.1} parent=1 // pred_check_branch
      %50 = sbr.rel (0) target = $region33
    $region32: #{tpu_custom_call.1} parent=1 // pred_region
      %51 = dma.done [#allocation6], 1536
    $region33: #{tpu_custom_call.1} parent=1 // pred_fallthru
      _
    %v52 = vlaneseq
    %v53 = vand.u32 %v52, 127
    %v54 = vld [vmem:[%s0] sm:$0xff]
    %55 = vset.pattern.permute.xlu0 0
    %56 = vperm.xlu0 %55, %v54
    %v57 = vpop.permute.xlu0 %56
    %vm58 = vcmp.eq.s32.totalorder %v53, %v57
    %v59 = vld [vmem:[%s1] sm:$0xff]
    %v60 = vadd.s32 %v59, 56
    %61 = vset.pattern.permute.xlu0 0
    %62 = vperm.xlu0 %61, %v60
    %v63 = vpop.permute.xlu0 %62
    %vm64 = vcmp.eq.s32.totalorder %v53, %v63
    %vm65 = vmor %vm58, %vm64
    %v66 = vsel %vm65, 1, 0
    %v67 = vcvt.s32.f32 %v66
    %v68 = vld [vmem:[#allocation2] sm:$0xff]
    %v69 = vld [vmem:[#allocation2 + $0x8] sm:$0xff]
    %v70 = vld [vmem:[#allocation2 + $0x10] sm:$0xff]
    %v71 = vld [vmem:[#allocation2 + $0x18] sm:$0xff]
    %v72 = vld [vmem:[#allocation2 + $0x20] sm:$0xff]
    %v73 = vld [vmem:[#allocation2 + $0x28] sm:$0xff]
    %v74 = vld [vmem:[#allocation2 + $0x30] sm:$0xff]
    %v75 = vld [vmem:[#allocation2 + $0x38] sm:$0xff]
    %v76 = vld [vmem:[#allocation2 + $0x40] sm:$0xff]
    %v77 = vld [vmem:[#allocation2 + $0x48] sm:$0xff]
    %v78 = vld [vmem:[#allocation5 + $0x50] sm:$0xff]
    %v79 = vld [vmem:[#allocation5 + $0x58] sm:$0xff]
    %v80 = vld [vmem:[%s2] sm:$0xff]
    %vm81 = vcmask 130048
    %v83 = vsel %vm81, %v80, 0
    %85 = vmatprep.subr.mxu0 0.0
    %v86 = vand.u32 %v78, 4294901760
    %87 = vmatpush1.msra.mxu0 %v86
    %88 = vmatprep.subr.mxu0 0.0
    %v89 = vand.u32 %v79, 4294901760
    %90 = vmatpush1.msra.mxu0 %v89
    %91 = vmatprep.subr.mxu0 0.0
    %92 = vmatpush1.msra.mxu0 0.0
    %93 = vmatprep.subr.mxu0 0.0
    %94 = vmatpush1.msra.mxu0 0.0
    %95 = vmatprep.subr.mxu0 0.0
    %96 = vmatpush1.msra.mxu0 0.0
    %97 = vmatprep.subr.mxu0 0.0
    %98 = vmatpush1.msra.mxu0 0.0
    %99 = vmatprep.subr.mxu0 0.0
    %100 = vmatpush1.msra.mxu0 0.0
    %101 = vmatprep.subr.mxu0 0.0
    %102 = vmatpush1.msra.mxu0 0.0
    %103 = vmatprep.subr.mxu0 0.0
    %104 = vmatpush1.msra.mxu0 0.0
    %105 = vmatprep.subr.mxu0 0.0
    %106 = vmatpush1.msra.mxu0 0.0
    %107 = vmatprep.subr.mxu0 0.0
    %108 = vmatpush1.msra.mxu0 0.0
    %109 = vmatprep.subr.mxu0 0.0
    %110 = vmatpush1.msra.mxu0 0.0
    %111 = vmatprep.subr.mxu0 0.0
    %112 = vmatpush1.msra.mxu0 0.0
    %113 = vmatprep.subr.mxu0 0.0
    %114 = vmatpush1.msra.mxu0 0.0
    %115 = vmatprep.subr.mxu0 0.0
    %116 = vmatpush1.msra.mxu0 0.0
    %117 = vmatprep.subr.mxu0 0.0
    %118 = vmatpush1.msra.mxu0 0.0
    %119 = vmatprep.subr.mxu0 0.0
    %120 = vmatpush1.msra.mxu0 0.0
    %121 = vmatprep.subr.mxu0 0.0
    %122 = vmatpush1.msra.mxu0 0.0
    %123 = vmatprep.subr.mxu0 0.0
    %124 = vmatpush1.msra.mxu0 0.0
    %125 = vmatprep.subr.mxu0 0.0
    %126 = vmatpush1.msra.mxu0 0.0
    %127 = vmatprep.subr.mxu0 0.0
    %128 = vmatpush1.msra.mxu0 0.0
    %129 = vmatprep.subr.mxu0 0.0
    %130 = vmatpush1.msra.mxu0 0.0
    %131 = vmatprep.subr.mxu0 0.0
    %132 = vmatpush1.msra.mxu0 0.0
    %133 = vmatprep.subr.mxu0 0.0
    %134 = vmatpush1.msra.mxu0 0.0
    %135 = vmatprep.subr.mxu0 0.0
    %136 = vmatpush1.msra.mxu0 0.0
    %137 = vmatprep.subr.mxu0 0.0
    %138 = vmatpush1.msra.mxu0 0.0
    %139 = vmatprep.subr.mxu0 0.0
    %140 = vmatpush1.msra.mxu0 0.0
    %141 = vmatprep.subr.mxu0 0.0
    %142 = vmatpush1.msra.mxu0 0.0
    %143 = vmatprep.subr.mxu0 0.0
    %144 = vmatpush1.msra.mxu0 0.0
    %145 = vmatprep.subr.mxu0 0.0
    %146 = vmatpush1.msra.mxu0 0.0
    %147 = vmatprep.subr.mxu0 0.0
    %148 = vmatpush1.msra.mxu0 0.0
    %149 = vmatprep.subr.mxu0 0.0
    %150 = vmatpush1.msra.mxu0 0.0
    %151 = vmatprep.mubr.f32.mxu0 0.0
    %v152 = vand.u32 %v83, 4294901760
    %v153 = vsub.f32 %v83, %v152
    %v154 = vand.u32 %v153, 4294901760
    %v155 = vsub.f32 %v153, %v154
    %v156 = vand.u32 %v155, 4294901760
    %157 = vmatmul.mubr.f32.gmra.mrb[0].mxu0 %v156
    %v158 = vpop.f32.mrb[0].mxu0
    %v159 = vadd.f32 0.0, %v158
    %v160 = vpop.f32.mrb[0].mxu0
    %161 = vdwg.mxu0
    %162 = vmatprep.subr.mxu0 0.0
    %v163 = vand.u32 %v78, 4294901760
    %v164 = vsub.f32 %v78, %v163
    %v165 = vand.u32 %v164, 4294901760
    %v166 = vsub.f32 %v164, %v165
    %v167 = vand.u32 %v166, 4294901760
    %168 = vmatpush1.msra.mxu0 %v167
    %169 = vmatprep.subr.mxu0 0.0
    %v170 = vand.u32 %v79, 4294901760
    %v171 = vsub.f32 %v79, %v170
    %v172 = vand.u32 %v171, 4294901760
    %v173 = vsub.f32 %v171, %v172
    %v174 = vand.u32 %v173, 4294901760
    %175 = vmatpush1.msra.mxu0 %v174
    %176 = vmatprep.subr.mxu0 0.0
    %177 = vmatpush1.msra.mxu0 0.0
    %178 = vmatprep.subr.mxu0 0.0
    %179 = vmatpush1.msra.mxu0 0.0
    %180 = vmatprep.subr.mxu0 0.0
    %181 = vmatpush1.msra.mxu0 0.0
    %182 = vmatprep.subr.mxu0 0.0
    %183 = vmatpush1.msra.mxu0 0.0
    %184 = vmatprep.subr.mxu0 0.0
    %185 = vmatpush1.msra.mxu0 0.0
    %186 = vmatprep.subr.mxu0 0.0
    %187 = vmatpush1.msra.mxu0 0.0
    %188 = vmatprep.subr.mxu0 0.0
    %189 = vmatpush1.msra.mxu0 0.0
    %190 = vmatprep.subr.mxu0 0.0
    %191 = vmatpush1.msra.mxu0 0.0
    %192 = vmatprep.subr.mxu0 0.0
    %193 = vmatpush1.msra.mxu0 0.0
    %194 = vmatprep.subr.mxu0 0.0
    %195 = vmatpush1.msra.mxu0 0.0
    %196 = vmatprep.subr.mxu0 0.0
    %197 = vmatpush1.msra.mxu0 0.0
    %198 = vmatprep.subr.mxu0 0.0
    %199 = vmatpush1.msra.mxu0 0.0
    %200 = vmatprep.subr.mxu0 0.0
    %201 = vmatpush1.msra.mxu0 0.0
    %202 = vmatprep.subr.mxu0 0.0
    %203 = vmatpush1.msra.mxu0 0.0
    %204 = vmatprep.subr.mxu0 0.0
    %205 = vmatpush1.msra.mxu0 0.0
    %206 = vmatprep.subr.mxu0 0.0
    %207 = vmatpush1.msra.mxu0 0.0
    %208 = vmatprep.subr.mxu0 0.0
    %209 = vmatpush1.msra.mxu0 0.0
    %210 = vmatprep.subr.mxu0 0.0
    %211 = vmatpush1.msra.mxu0 0.0
    %212 = vmatprep.subr.mxu0 0.0
    %213 = vmatpush1.msra.mxu0 0.0
    %214 = vmatprep.subr.mxu0 0.0
    %215 = vmatpush1.msra.mxu0 0.0
    %216 = vmatprep.subr.mxu0 0.0
    %217 = vmatpush1.msra.mxu0 0.0
    %218 = vmatprep.subr.mxu0 0.0
    %219 = vmatpush1.msra.mxu0 0.0
    %220 = vmatprep.subr.mxu0 0.0
    %221 = vmatpush1.msra.mxu0 0.0
    %222 = vmatprep.subr.mxu0 0.0
    %223 = vmatpush1.msra.mxu0 0.0
    %224 = vmatprep.subr.mxu0 0.0
    %225 = vmatpush1.msra.mxu0 0.0
    %226 = vmatprep.subr.mxu0 0.0
    %227 = vmatpush1.msra.mxu0 0.0
    %228 = vmatprep.subr.mxu0 0.0
    %229 = vmatpush1.msra.mxu0 0.0
    %230 = vmatprep.subr.mxu0 0.0
    %231 = vmatpush1.msra.mxu0 0.0
    %232 = vmatprep.subr.mxu0 0.0
    %233 = vmatpush1.msra.mxu0 0.0
    %234 = vmatprep.subr.mxu0 0.0
    %235 = vmatpush1.msra.mxu0 0.0
    %236 = vmatprep.mubr.f32.mxu0 0.0
    %v237 = vand.u32 %v83, 4294901760
    %238 = vmatmul.mubr.f32.gmra.mrb[0].mxu0 %v237
    %v239 = vpop.f32.mrb[0].mxu0
    %v240 = vadd.f32 %v159, %v239
    %v241 = vpop.f32.mrb[0].mxu0
    %242 = vdwg.mxu0
    %243 = vmatprep.subr.mxu0 0.0
    %v244 = vand.u32 %v78, 4294901760
    %v245 = vsub.f32 %v78, %v244
    %246 = vmatpush1.msra.mxu0 %v245
    %247 = vmatprep.subr.mxu0 0.0
    %v248 = vand.u32 %v79, 4294901760
    %v249 = vsub.f32 %v79, %v248
    %250 = vmatpush1.msra.mxu0 %v249
    %251 = vmatprep.subr.mxu0 0.0
    %252 = vmatpush1.msra.mxu0 0.0
    %253 = vmatprep.subr.mxu0 0.0
    %254 = vmatpush1.msra.mxu0 0.0
    %255 = vmatprep.subr.mxu0 0.0
    %256 = vmatpush1.msra.mxu0 0.0
    %257 = vmatprep.subr.mxu0 0.0
    %258 = vmatpush1.msra.mxu0 0.0
    %259 = vmatprep.subr.mxu0 0.0
    %260 = vmatpush1.msra.mxu0 0.0
    %261 = vmatprep.subr.mxu0 0.0
    %262 = vmatpush1.msra.mxu0 0.0
    %263 = vmatprep.subr.mxu0 0.0
    %264 = vmatpush1.msra.mxu0 0.0
    %265 = vmatprep.subr.mxu0 0.0
    %266 = vmatpush1.msra.mxu0 0.0
    %267 = vmatprep.subr.mxu0 0.0
    %268 = vmatpush1.msra.mxu0 0.0
    %269 = vmatprep.subr.mxu0 0.0
    %270 = vmatpush1.msra.mxu0 0.0
    %271 = vmatprep.subr.mxu0 0.0
    %272 = vmatpush1.msra.mxu0 0.0
    %273 = vmatprep.subr.mxu0 0.0
    %274 = vmatpush1.msra.mxu0 0.0
    %275 = vmatprep.subr.mxu0 0.0
    %276 = vmatpush1.msra.mxu0 0.0
    %277 = vmatprep.subr.mxu0 0.0
    %278 = vmatpush1.msra.mxu0 0.0
    %279 = vmatprep.subr.mxu0 0.0
    %280 = vmatpush1.msra.mxu0 0.0
    %281 = vmatprep.subr.mxu0 0.0
    %282 = vmatpush1.msra.mxu0 0.0
    %283 = vmatprep.subr.mxu0 0.0
    %284 = vmatpush1.msra.mxu0 0.0
    %285 = vmatprep.subr.mxu0 0.0
    %286 = vmatpush1.msra.mxu0 0.0
    %287 = vmatprep.subr.mxu0 0.0
    %288 = vmatpush1.msra.mxu0 0.0
    %289 = vmatprep.subr.mxu0 0.0
    %290 = vmatpush1.msra.mxu0 0.0
    %291 = vmatprep.subr.mxu0 0.0
    %292 = vmatpush1.msra.mxu0 0.0
    %293 = vmatprep.subr.mxu0 0.0
    %294 = vmatpush1.msra.mxu0 0.0
    %295 = vmatprep.subr.mxu0 0.0
    %296 = vmatpush1.msra.mxu0 0.0
    %297 = vmatprep.subr.mxu0 0.0
    %298 = vmatpush1.msra.mxu0 0.0
    %299 = vmatprep.subr.mxu0 0.0
    %300 = vmatpush1.msra.mxu0 0.0
    %301 = vmatprep.subr.mxu0 0.0
    %302 = vmatpush1.msra.mxu0 0.0
    %303 = vmatprep.subr.mxu0 0.0
    %304 = vmatpush1.msra.mxu0 0.0
    %305 = vmatprep.subr.mxu0 0.0
    %306 = vmatpush1.msra.mxu0 0.0
    %307 = vmatprep.subr.mxu0 0.0
    %308 = vmatpush1.msra.mxu0 0.0
    %309 = vmatprep.subr.mxu0 0.0
    %310 = vmatpush1.msra.mxu0 0.0
    %311 = vmatprep.mubr.f32.mxu0 0.0
    %v312 = vand.u32 %v83, 4294901760
    %v313 = vsub.f32 %v83, %v312
    %314 = vmatmul.mubr.f32.gmra.mrb[0].mxu0 %v313
    %v315 = vpop.f32.mrb[0].mxu0
    %v316 = vadd.f32 %v240, %v315
    %v317 = vpop.f32.mrb[0].mxu0
    %318 = vdwg.mxu0
    %319 = vmatprep.subr.mxu0 0.0
    %v320 = vand.u32 %v78, 4294901760
    %321 = vmatpush1.msra.mxu0 %v320
    %322 = vmatprep.subr.mxu0 0.0
    %v323 = vand.u32 %v79, 4294901760
    %324 = vmatpush1.msra.mxu0 %v323
    %325 = vmatprep.subr.mxu0 0.0
    %326 = vmatpush1.msra.mxu0 0.0
    %327 = vmatprep.subr.mxu0 0.0
    %328 = vmatpush1.msra.mxu0 0.0
    %329 = vmatprep.subr.mxu0 0.0
    %330 = vmatpush1.msra.mxu0 0.0
    %331 = vmatprep.subr.mxu0 0.0
    %332 = vmatpush1.msra.mxu0 0.0
    %333 = vmatprep.subr.mxu0 0.0
    %334 = vmatpush1.msra.mxu0 0.0
    %335 = vmatprep.subr.mxu0 0.0
    %336 = vmatpush1.msra.mxu0 0.0
    %337 = vmatprep.subr.mxu0 0.0
    %338 = vmatpush1.msra.mxu0 0.0
    %339 = vmatprep.subr.mxu0 0.0
    %340 = vmatpush1.msra.mxu0 0.0
    %341 = vmatprep.subr.mxu0 0.0
    %342 = vmatpush1.msra.mxu0 0.0
    %343 = vmatprep.subr.mxu0 0.0
    %344 = vmatpush1.msra.mxu0 0.0
    %345 = vmatprep.subr.mxu0 0.0
    %346 = vmatpush1.msra.mxu0 0.0
    %347 = vmatprep.subr.mxu0 0.0
    %348 = vmatpush1.msra.mxu0 0.0
    %349 = vmatprep.subr.mxu0 0.0
    %350 = vmatpush1.msra.mxu0 0.0
    %351 = vmatprep.subr.mxu0 0.0
    %352 = vmatpush1.msra.mxu0 0.0
    %353 = vmatprep.subr.mxu0 0.0
    %354 = vmatpush1.msra.mxu0 0.0
    %355 = vmatprep.subr.mxu0 0.0
    %356 = vmatpush1.msra.mxu0 0.0
    %357 = vmatprep.subr.mxu0 0.0
    %358 = vmatpush1.msra.mxu0 0.0
    %359 = vmatprep.subr.mxu0 0.0
    %360 = vmatpush1.msra.mxu0 0.0
    %361 = vmatprep.subr.mxu0 0.0
    %362 = vmatpush1.msra.mxu0 0.0
    %363 = vmatprep.subr.mxu0 0.0
    %364 = vmatpush1.msra.mxu0 0.0
    %365 = vmatprep.subr.mxu0 0.0
    %366 = vmatpush1.msra.mxu0 0.0
    %367 = vmatprep.subr.mxu0 0.0
    %368 = vmatpush1.msra.mxu0 0.0
    %369 = vmatprep.subr.mxu0 0.0
    %370 = vmatpush1.msra.mxu0 0.0
    %371 = vmatprep.subr.mxu0 0.0
    %372 = vmatpush1.msra.mxu0 0.0
    %373 = vmatprep.subr.mxu0 0.0
    %374 = vmatpush1.msra.mxu0 0.0
    %375 = vmatprep.subr.mxu0 0.0
    %376 = vmatpush1.msra.mxu0 0.0
    %377 = vmatprep.subr.mxu0 0.0
    %378 = vmatpush1.msra.mxu0 0.0
    %379 = vmatprep.subr.mxu0 0.0
    %380 = vmatpush1.msra.mxu0 0.0
    %381 = vmatprep.subr.mxu0 0.0
    %382 = vmatpush1.msra.mxu0 0.0
    %383 = vmatprep.subr.mxu0 0.0
    %384 = vmatpush1.msra.mxu0 0.0
    %385 = vmatprep.mubr.f32.mxu0 0.0
    %v386 = vand.u32 %v83, 4294901760
    %v387 = vsub.f32 %v83, %v386
    %v388 = vand.u32 %v387, 4294901760
    %389 = vmatmul.mubr.f32.gmra.mrb[0].mxu0 %v388
    %v390 = vpop.f32.mrb[0].mxu0
    %v391 = vadd.f32 %v316, %v390
    %v392 = vpop.f32.mrb[0].mxu0
    %393 = vdwg.mxu0
    %394 = vmatprep.subr.mxu0 0.0
    %v395 = vand.u32 %v78, 4294901760
    %v396 = vsub.f32 %v78, %v395
    %v397 = vand.u32 %v396, 4294901760
    %398 = vmatpush1.msra.mxu0 %v397
    %399 = vmatprep.subr.mxu0 0.0
    %v400 = vand.u32 %v79, 4294901760
    %v401 = vsub.f32 %v79, %v400
    %v402 = vand.u32 %v401, 4294901760
    %403 = vmatpush1.msra.mxu0 %v402
    %404 = vmatprep.subr.mxu0 0.0
    %405 = vmatpush1.msra.mxu0 0.0
    %406 = vmatprep.subr.mxu0 0.0
    %407 = vmatpush1.msra.mxu0 0.0
    %408 = vmatprep.subr.mxu0 0.0
    %409 = vmatpush1.msra.mxu0 0.0
    %410 = vmatprep.subr.mxu0 0.0
    %411 = vmatpush1.msra.mxu0 0.0
    %412 = vmatprep.subr.mxu0 0.0
    %413 = vmatpush1.msra.mxu0 0.0
    %414 = vmatprep.subr.mxu0 0.0
    %415 = vmatpush1.msra.mxu0 0.0
    %416 = vmatprep.subr.mxu0 0.0
    %417 = vmatpush1.msra.mxu0 0.0
    %418 = vmatprep.subr.mxu0 0.0
    %419 = vmatpush1.msra.mxu0 0.0
    %420 = vmatprep.subr.mxu0 0.0
    %421 = vmatpush1.msra.mxu0 0.0
    %422 = vmatprep.subr.mxu0 0.0
    %423 = vmatpush1.msra.mxu0 0.0
    %424 = vmatprep.subr.mxu0 0.0
    %425 = vmatpush1.msra.mxu0 0.0
    %426 = vmatprep.subr.mxu0 0.0
    %427 = vmatpush1.msra.mxu0 0.0
    %428 = vmatprep.subr.mxu0 0.0
    %429 = vmatpush1.msra.mxu0 0.0
    %430 = vmatprep.subr.mxu0 0.0
    %431 = vmatpush1.msra.mxu0 0.0
    %432 = vmatprep.subr.mxu0 0.0
    %433 = vmatpush1.msra.mxu0 0.0
    %434 = vmatprep.subr.mxu0 0.0
    %435 = vmatpush1.msra.mxu0 0.0
    %436 = vmatprep.subr.mxu0 0.0
    %437 = vmatpush1.msra.mxu0 0.0
    %438 = vmatprep.subr.mxu0 0.0
    %439 = vmatpush1.msra.mxu0 0.0
    %440 = vmatprep.subr.mxu0 0.0
    %441 = vmatpush1.msra.mxu0 0.0
    %442 = vmatprep.subr.mxu0 0.0
    %443 = vmatpush1.msra.mxu0 0.0
    %444 = vmatprep.subr.mxu0 0.0
    %445 = vmatpush1.msra.mxu0 0.0
    %446 = vmatprep.subr.mxu0 0.0
    %447 = vmatpush1.msra.mxu0 0.0
    %448 = vmatprep.subr.mxu0 0.0
    %449 = vmatpush1.msra.mxu0 0.0
    %450 = vmatprep.subr.mxu0 0.0
    %451 = vmatpush1.msra.mxu0 0.0
    %452 = vmatprep.subr.mxu0 0.0
    %453 = vmatpush1.msra.mxu0 0.0
    %454 = vmatprep.subr.mxu0 0.0
    %455 = vmatpush1.msra.mxu0 0.0
    %456 = vmatprep.subr.mxu0 0.0
    %457 = vmatpush1.msra.mxu0 0.0
    %458 = vmatprep.subr.mxu0 0.0
    %459 = vmatpush1.msra.mxu0 0.0
    %460 = vmatprep.subr.mxu0 0.0
    %461 = vmatpush1.msra.mxu0 0.0
    %462 = vmatprep.subr.mxu0 0.0
    %463 = vmatpush1.msra.mxu0 0.0
    %464 = vmatprep.mubr.f32.mxu0 0.0
    %v465 = vand.u32 %v83, 4294901760
    %466 = vmatmul.mubr.f32.gmra.mrb[0].mxu0 %v465
    %v467 = vpop.f32.mrb[0].mxu0
    %v468 = vadd.f32 %v391, %v467
    %v469 = vpop.f32.mrb[0].mxu0
    %470 = vdwg.mxu0
    %471 = vmatprep.subr.mxu0 0.0
    %v472 = vand.u32 %v78, 4294901760
    %473 = vmatpush1.msra.mxu0 %v472
    %474 = vmatprep.subr.mxu0 0.0
    %v475 = vand.u32 %v79, 4294901760
    %476 = vmatpush1.msra.mxu0 %v475
    %477 = vmatprep.subr.mxu0 0.0
    %478 = vmatpush1.msra.mxu0 0.0
    %479 = vmatprep.subr.mxu0 0.0
    %480 = vmatpush1.msra.mxu0 0.0
    %481 = vmatprep.subr.mxu0 0.0
    %482 = vmatpush1.msra.mxu0 0.0
    %483 = vmatprep.subr.mxu0 0.0
    %484 = vmatpush1.msra.mxu0 0.0
    %485 = vmatprep.subr.mxu0 0.0
    %486 = vmatpush1.msra.mxu0 0.0
    %487 = vmatprep.subr.mxu0 0.0
    %488 = vmatpush1.msra.mxu0 0.0
    %489 = vmatprep.subr.mxu0 0.0
    %490 = vmatpush1.msra.mxu0 0.0
    %491 = vmatprep.subr.mxu0 0.0
    %492 = vmatpush1.msra.mxu0 0.0
    %493 = vmatprep.subr.mxu0 0.0
    %494 = vmatpush1.msra.mxu0 0.0
    %495 = vmatprep.subr.mxu0 0.0
    %496 = vmatpush1.msra.mxu0 0.0
    %497 = vmatprep.subr.mxu0 0.0
    %498 = vmatpush1.msra.mxu0 0.0
    %499 = vmatprep.subr.mxu0 0.0
    %500 = vmatpush1.msra.mxu0 0.0
    %501 = vmatprep.subr.mxu0 0.0
    %502 = vmatpush1.msra.mxu0 0.0
    %503 = vmatprep.subr.mxu0 0.0
    %504 = vmatpush1.msra.mxu0 0.0
    %505 = vmatprep.subr.mxu0 0.0
    %506 = vmatpush1.msra.mxu0 0.0
    %507 = vmatprep.subr.mxu0 0.0
    %508 = vmatpush1.msra.mxu0 0.0
    %509 = vmatprep.subr.mxu0 0.0
    %510 = vmatpush1.msra.mxu0 0.0
    %511 = vmatprep.subr.mxu0 0.0
    %512 = vmatpush1.msra.mxu0 0.0
    %513 = vmatprep.subr.mxu0 0.0
    %514 = vmatpush1.msra.mxu0 0.0
    %515 = vmatprep.subr.mxu0 0.0
    %516 = vmatpush1.msra.mxu0 0.0
    %517 = vmatprep.subr.mxu0 0.0
    %518 = vmatpush1.msra.mxu0 0.0
    %519 = vmatprep.subr.mxu0 0.0
    %520 = vmatpush1.msra.mxu0 0.0
    %521 = vmatprep.subr.mxu0 0.0
    %522 = vmatpush1.msra.mxu0 0.0
    %523 = vmatprep.subr.mxu0 0.0
    %524 = vmatpush1.msra.mxu0 0.0
    %525 = vmatprep.subr.mxu0 0.0
    %526 = vmatpush1.msra.mxu0 0.0
    %527 = vmatprep.subr.mxu0 0.0
    %528 = vmatpush1.msra.mxu0 0.0
    %529 = vmatprep.subr.mxu0 0.0
    %530 = vmatpush1.msra.mxu0 0.0
    %531 = vmatprep.subr.mxu0 0.0
    %532 = vmatpush1.msra.mxu0 0.0
    %533 = vmatprep.subr.mxu0 0.0
    %534 = vmatpush1.msra.mxu0 0.0
    %535 = vmatprep.subr.mxu0 0.0
    %536 = vmatpush1.msra.mxu0 0.0
    %537 = vmatprep.mubr.f32.mxu0 0.0
    %v538 = vand.u32 %v83, 4294901760
    %539 = vmatmul.mubr.f32.gmra.mrb[0].mxu0 %v538
    %v540 = vpop.f32.mrb[0].mxu0
    %v541 = vadd.f32 %v468, %v540
    %v542 = vpop.f32.mrb[0].mxu0
    %543 = vdwg.mxu0
    %vm544 = vcmask 654336
    %v546 = vsel %vm544, %v67, 0
    %548 = vmatprep.subr.mxu0 0.0
    %v549 = vand.u32 %v68, 4294901760
    %550 = vmatpush1.msra.mxu0 %v549
    %551 = vmatprep.subr.mxu0 0.0
    %v552 = vand.u32 %v69, 4294901760
    %553 = vmatpush1.msra.mxu0 %v552
    %554 = vmatprep.subr.mxu0 0.0
    %v555 = vand.u32 %v70, 4294901760
    %556 = vmatpush1.msra.mxu0 %v555
    %557 = vmatprep.subr.mxu0 0.0
    %v558 = vand.u32 %v71, 4294901760
    %559 = vmatpush1.msra.mxu0 %v558
    %560 = vmatprep.subr.mxu0 0.0
    %v561 = vand.u32 %v72, 4294901760
    %562 = vmatpush1.msra.mxu0 %v561
    %563 = vmatprep.subr.mxu0 0.0
    %v564 = vand.u32 %v73, 4294901760
    %565 = vmatpush1.msra.mxu0 %v564
    %566 = vmatprep.subr.mxu0 0.0
    %v567 = vand.u32 %v74, 4294901760
    %568 = vmatpush1.msra.mxu0 %v567
    %569 = vmatprep.subr.mxu0 0.0
    %v570 = vand.u32 %v75, 4294901760
    %571 = vmatpush1.msra.mxu0 %v570
    %572 = vmatprep.subr.mxu0 0.0
    %v573 = vand.u32 %v76, 4294901760
    %574 = vmatpush1.msra.mxu0 %v573
    %575 = vmatprep.subr.mxu0 0.0
    %v576 = vand.u32 %v77, 4294901760
    %577 = vmatpush1.msra.mxu0 %v576
    %578 = vmatprep.subr.mxu0 0.0
    %579 = vmatpush1.msra.mxu0 0.0
    %580 = vmatprep.subr.mxu0 0.0
    %581 = vmatpush1.msra.mxu0 0.0
    %582 = vmatprep.subr.mxu0 0.0
    %583 = vmatpush1.msra.mxu0 0.0
    %584 = vmatprep.subr.mxu0 0.0
    %585 = vmatpush1.msra.mxu0 0.0
    %586 = vmatprep.subr.mxu0 0.0
    %587 = vmatpush1.msra.mxu0 0.0
    %588 = vmatprep.subr.mxu0 0.0
    %589 = vmatpush1.msra.mxu0 0.0
    %590 = vmatprep.subr.mxu0 0.0
    %591 = vmatpush1.msra.mxu0 0.0
    %592 = vmatprep.subr.mxu0 0.0
    %593 = vmatpush1.msra.mxu0 0.0
    %594 = vmatprep.subr.mxu0 0.0
    %595 = vmatpush1.msra.mxu0 0.0
    %596 = vmatprep.subr.mxu0 0.0
    %597 = vmatpush1.msra.mxu0 0.0
    %598 = vmatprep.subr.mxu0 0.0
    %599 = vmatpush1.msra.mxu0 0.0
    %600 = vmatprep.subr.mxu0 0.0
    %601 = vmatpush1.msra.mxu0 0.0
    %602 = vmatprep.subr.mxu0 0.0
    %603 = vmatpush1.msra.mxu0 0.0
    %604 = vmatprep.subr.mxu0 0.0
    %605 = vmatpush1.msra.mxu0 0.0
    %606 = vmatprep.subr.mxu0 0.0
    %607 = vmatpush1.msra.mxu0 0.0
    %608 = vmatprep.subr.mxu0 0.0
    %609 = vmatpush1.msra.mxu0 0.0
    %610 = vmatprep.subr.mxu0 0.0
    %611 = vmatpush1.msra.mxu0 0.0
    %612 = vmatprep.subr.mxu0 0.0
    %613 = vmatpush1.msra.mxu0 0.0
    %614 = vmatprep.subr.mxu0 0.0
    %615 = vmatpush1.msra.mxu0 0.0
    %616 = vmatprep.subr.mxu0 0.0
    %617 = vmatpush1.msra.mxu0 0.0
    %618 = vmatprep.subr.mxu0 0.0
    %619 = vmatpush1.msra.mxu0 0.0
    %620 = vmatprep.subr.mxu0 0.0
    %621 = vmatpush1.msra.mxu0 0.0
    %622 = vmatprep.mubr.f32.mxu0 0.0
    %v623 = vand.u32 %v546, 4294901760
    %v624 = vsub.f32 %v546, %v623
    %v625 = vand.u32 %v624, 4294901760
    %v626 = vsub.f32 %v624, %v625
    %v627 = vand.u32 %v626, 4294901760
    %628 = vmatmul.mubr.f32.gmra.mrb[0].mxu0 %v627
    %v629 = vpop.f32.mrb[0].mxu0
    %v630 = vadd.f32 %v541, %v629
    %v631 = vpop.f32.mrb[0].mxu0
    %632 = vdwg.mxu0
    %633 = vmatprep.subr.mxu0 0.0
    %v634 = vand.u32 %v68, 4294901760
    %v635 = vsub.f32 %v68, %v634
    %v636 = vand.u32 %v635, 4294901760
    %v637 = vsub.f32 %v635, %v636
    %v638 = vand.u32 %v637, 4294901760
    %639 = vmatpush1.msra.mxu0 %v638
    %640 = vmatprep.subr.mxu0 0.0
    %v641 = vand.u32 %v69, 4294901760
    %v642 = vsub.f32 %v69, %v641
    %v643 = vand.u32 %v642, 4294901760
    %v644 = vsub.f32 %v642, %v643
    %v645 = vand.u32 %v644, 4294901760
    %646 = vmatpush1.msra.mxu0 %v645
    %647 = vmatprep.subr.mxu0 0.0
    %v648 = vand.u32 %v70, 4294901760
    %v649 = vsub.f32 %v70, %v648
    %v650 = vand.u32 %v649, 4294901760
    %v651 = vsub.f32 %v649, %v650
    %v652 = vand.u32 %v651, 4294901760
    %653 = vmatpush1.msra.mxu0 %v652
    %654 = vmatprep.subr.mxu0 0.0
    %v655 = vand.u32 %v71, 4294901760
    %v656 = vsub.f32 %v71, %v655
    %v657 = vand.u32 %v656, 4294901760
    %v658 = vsub.f32 %v656, %v657
    %v659 = vand.u32 %v658, 4294901760
    %660 = vmatpush1.msra.mxu0 %v659
    %661 = vmatprep.subr.mxu0 0.0
    %v662 = vand.u32 %v72, 4294901760
    %v663 = vsub.f32 %v72, %v662
    %v664 = vand.u32 %v663, 4294901760
    %v665 = vsub.f32 %v663, %v664
    %v666 = vand.u32 %v665, 4294901760
    %667 = vmatpush1.msra.mxu0 %v666
    %668 = vmatprep.subr.mxu0 0.0
    %v669 = vand.u32 %v73, 4294901760
    %v670 = vsub.f32 %v73, %v669
    %v671 = vand.u32 %v670, 4294901760
    %v672 = vsub.f32 %v670, %v671
    %v673 = vand.u32 %v672, 4294901760
    %674 = vmatpush1.msra.mxu0 %v673
    %675 = vmatprep.subr.mxu0 0.0
    %v676 = vand.u32 %v74, 4294901760
    %v677 = vsub.f32 %v74, %v676
    %v678 = vand.u32 %v677, 4294901760
    %v679 = vsub.f32 %v677, %v678
    %v680 = vand.u32 %v679, 4294901760
    %681 = vmatpush1.msra.mxu0 %v680
    %682 = vmatprep.subr.mxu0 0.0
    %v683 = vand.u32 %v75, 4294901760
    %v684 = vsub.f32 %v75, %v683
    %v685 = vand.u32 %v684, 4294901760
    %v686 = vsub.f32 %v684, %v685
    %v687 = vand.u32 %v686, 4294901760
    %688 = vmatpush1.msra.mxu0 %v687
    %689 = vmatprep.subr.mxu0 0.0
    %v690 = vand.u32 %v76, 4294901760
    %v691 = vsub.f32 %v76, %v690
    %v692 = vand.u32 %v691, 4294901760
    %v693 = vsub.f32 %v691, %v692
    %v694 = vand.u32 %v693, 4294901760
    %695 = vmatpush1.msra.mxu0 %v694
    %696 = vmatprep.subr.mxu0 0.0
    %v697 = vand.u32 %v77, 4294901760
    %v698 = vsub.f32 %v77, %v697
    %v699 = vand.u32 %v698, 4294901760
    %v700 = vsub.f32 %v698, %v699
    %v701 = vand.u32 %v700, 4294901760
    %702 = vmatpush1.msra.mxu0 %v701
    %703 = vmatprep.subr.mxu0 0.0
    %704 = vmatpush1.msra.mxu0 0.0
    %705 = vmatprep.subr.mxu0 0.0
    %706 = vmatpush1.msra.mxu0 0.0
    %707 = vmatprep.subr.mxu0 0.0
    %708 = vmatpush1.msra.mxu0 0.0
    %709 = vmatprep.subr.mxu0 0.0
    %710 = vmatpush1.msra.mxu0 0.0
    %711 = vmatprep.subr.mxu0 0.0
    %712 = vmatpush1.msra.mxu0 0.0
    %713 = vmatprep.subr.mxu0 0.0
    %714 = vmatpush1.msra.mxu0 0.0
    %715 = vmatprep.subr.mxu0 0.0
    %716 = vmatpush1.msra.mxu0 0.0
    %717 = vmatprep.subr.mxu0 0.0
    %718 = vmatpush1.msra.mxu0 0.0
    %719 = vmatprep.subr.mxu0 0.0
    %720 = vmatpush1.msra.mxu0 0.0
    %721 = vmatprep.subr.mxu0 0.0
    %722 = vmatpush1.msra.mxu0 0.0
    %723 = vmatprep.subr.mxu0 0.0
    %724 = vmatpush1.msra.mxu0 0.0
    %725 = vmatprep.subr.mxu0 0.0
    %726 = vmatpush1.msra.mxu0 0.0
    %727 = vmatprep.subr.mxu0 0.0
    %728 = vmatpush1.msra.mxu0 0.0
    %729 = vmatprep.subr.mxu0 0.0
    %730 = vmatpush1.msra.mxu0 0.0
    %731 = vmatprep.subr.mxu0 0.0
    %732 = vmatpush1.msra.mxu0 0.0
    %733 = vmatprep.subr.mxu0 0.0
    %734 = vmatpush1.msra.mxu0 0.0
    %735 = vmatprep.subr.mxu0 0.0
    %736 = vmatpush1.msra.mxu0 0.0
    %737 = vmatprep.subr.mxu0 0.0
    %738 = vmatpush1.msra.mxu0 0.0
    %739 = vmatprep.subr.mxu0 0.0
    %740 = vmatpush1.msra.mxu0 0.0
    %741 = vmatprep.subr.mxu0 0.0
    %742 = vmatpush1.msra.mxu0 0.0
    %743 = vmatprep.subr.mxu0 0.0
    %744 = vmatpush1.msra.mxu0 0.0
    %745 = vmatprep.subr.mxu0 0.0
    %746 = vmatpush1.msra.mxu0 0.0
    %747 = vmatprep.mubr.f32.mxu0 0.0
    %v748 = vand.u32 %v546, 4294901760
    %749 = vmatmul.mubr.f32.gmra.mrb[0].mxu0 %v748
    %v750 = vpop.f32.mrb[0].mxu0
    %v751 = vadd.f32 %v630, %v750
    %v752 = vpop.f32.mrb[0].mxu0
    %753 = vdwg.mxu0
    %754 = vmatprep.subr.mxu0 0.0
    %v755 = vand.u32 %v68, 4294901760
    %v756 = vsub.f32 %v68, %v755
    %757 = vmatpush1.msra.mxu0 %v756
    %758 = vmatprep.subr.mxu0 0.0
    %v759 = vand.u32 %v69, 4294901760
    %v760 = vsub.f32 %v69, %v759
    %761 = vmatpush1.msra.mxu0 %v760
    %762 = vmatprep.subr.mxu0 0.0
    %v763 = vand.u32 %v70, 4294901760
    %v764 = vsub.f32 %v70, %v763
    %765 = vmatpush1.msra.mxu0 %v764
    %766 = vmatprep.subr.mxu0 0.0
    %v767 = vand.u32 %v71, 4294901760
    %v768 = vsub.f32 %v71, %v767
    %769 = vmatpush1.msra.mxu0 %v768
    %770 = vmatprep.subr.mxu0 0.0
    %v771 = vand.u32 %v72, 4294901760
    %v772 = vsub.f32 %v72, %v771
    %773 = vmatpush1.msra.mxu0 %v772
    %774 = vmatprep.subr.mxu0 0.0
    %v775 = vand.u32 %v73, 4294901760
    %v776 = vsub.f32 %v73, %v775
    %777 = vmatpush1.msra.mxu0 %v776
    %778 = vmatprep.subr.mxu0 0.0
    %v779 = vand.u32 %v74, 4294901760
    %v780 = vsub.f32 %v74, %v779
    %781 = vmatpush1.msra.mxu0 %v780
    %782 = vmatprep.subr.mxu0 0.0
    %v783 = vand.u32 %v75, 4294901760
    %v784 = vsub.f32 %v75, %v783
    %785 = vmatpush1.msra.mxu0 %v784
    %786 = vmatprep.subr.mxu0 0.0
    %v787 = vand.u32 %v76, 4294901760
    %v788 = vsub.f32 %v76, %v787
    %789 = vmatpush1.msra.mxu0 %v788
    %790 = vmatprep.subr.mxu0 0.0
    %v791 = vand.u32 %v77, 4294901760
    %v792 = vsub.f32 %v77, %v791
    %793 = vmatpush1.msra.mxu0 %v792
    %794 = vmatprep.subr.mxu0 0.0
    %795 = vmatpush1.msra.mxu0 0.0
    %796 = vmatprep.subr.mxu0 0.0
    %797 = vmatpush1.msra.mxu0 0.0
    %798 = vmatprep.subr.mxu0 0.0
    %799 = vmatpush1.msra.mxu0 0.0
    %800 = vmatprep.subr.mxu0 0.0
    %801 = vmatpush1.msra.mxu0 0.0
    %802 = vmatprep.subr.mxu0 0.0
    %803 = vmatpush1.msra.mxu0 0.0
    %804 = vmatprep.subr.mxu0 0.0
    %805 = vmatpush1.msra.mxu0 0.0
    %806 = vmatprep.subr.mxu0 0.0
    %807 = vmatpush1.msra.mxu0 0.0
    %808 = vmatprep.subr.mxu0 0.0
    %809 = vmatpush1.msra.mxu0 0.0
    %810 = vmatprep.subr.mxu0 0.0
    %811 = vmatpush1.msra.mxu0 0.0
    %812 = vmatprep.subr.mxu0 0.0
    %813 = vmatpush1.msra.mxu0 0.0
    %814 = vmatprep.subr.mxu0 0.0
    %815 = vmatpush1.msra.mxu0 0.0
    %816 = vmatprep.subr.mxu0 0.0
    %817 = vmatpush1.msra.mxu0 0.0
    %818 = vmatprep.subr.mxu0 0.0
    %819 = vmatpush1.msra.mxu0 0.0
    %820 = vmatprep.subr.mxu0 0.0
    %821 = vmatpush1.msra.mxu0 0.0
    %822 = vmatprep.subr.mxu0 0.0
    %823 = vmatpush1.msra.mxu0 0.0
    %824 = vmatprep.subr.mxu0 0.0
    %825 = vmatpush1.msra.mxu0 0.0
    %826 = vmatprep.subr.mxu0 0.0
    %827 = vmatpush1.msra.mxu0 0.0
    %828 = vmatprep.subr.mxu0 0.0
    %829 = vmatpush1.msra.mxu0 0.0
    %830 = vmatprep.subr.mxu0 0.0
    %831 = vmatpush1.msra.mxu0 0.0
    %832 = vmatprep.subr.mxu0 0.0
    %833 = vmatpush1.msra.mxu0 0.0
    %834 = vmatprep.subr.mxu0 0.0
    %835 = vmatpush1.msra.mxu0 0.0
    %836 = vmatprep.subr.mxu0 0.0
    %837 = vmatpush1.msra.mxu0 0.0
    %838 = vmatprep.mubr.f32.mxu0 0.0
    %v839 = vand.u32 %v546, 4294901760
    %v840 = vsub.f32 %v546, %v839
    %841 = vmatmul.mubr.f32.gmra.mrb[0].mxu0 %v840
    %v842 = vpop.f32.mrb[0].mxu0
    %v843 = vadd.f32 %v751, %v842
    %v844 = vpop.f32.mrb[0].mxu0
    %845 = vdwg.mxu0
    %846 = vmatprep.subr.mxu0 0.0
    %v847 = vand.u32 %v68, 4294901760
    %848 = vmatpush1.msra.mxu0 %v847
    %849 = vmatprep.subr.mxu0 0.0
    %v850 = vand.u32 %v69, 4294901760
    %851 = vmatpush1.msra.mxu0 %v850
    %852 = vmatprep.subr.mxu0 0.0
    %v853 = vand.u32 %v70, 4294901760
    %854 = vmatpush1.msra.mxu0 %v853
    %855 = vmatprep.subr.mxu0 0.0
    %v856 = vand.u32 %v71, 4294901760
    %857 = vmatpush1.msra.mxu0 %v856
    %858 = vmatprep.subr.mxu0 0.0
    %v859 = vand.u32 %v72, 4294901760
    %860 = vmatpush1.msra.mxu0 %v859
    %861 = vmatprep.subr.mxu0 0.0
    %v862 = vand.u32 %v73, 4294901760
    %863 = vmatpush1.msra.mxu0 %v862
    %864 = vmatprep.subr.mxu0 0.0
    %v865 = vand.u32 %v74, 4294901760
    %866 = vmatpush1.msra.mxu0 %v865
    %867 = vmatprep.subr.mxu0 0.0
    %v868 = vand.u32 %v75, 4294901760
    %869 = vmatpush1.msra.mxu0 %v868
    %870 = vmatprep.subr.mxu0 0.0
    %v871 = vand.u32 %v76, 4294901760
    %872 = vmatpush1.msra.mxu0 %v871
    %873 = vmatprep.subr.mxu0 0.0
    %v874 = vand.u32 %v77, 4294901760
    %875 = vmatpush1.msra.mxu0 %v874
    %876 = vmatprep.subr.mxu0 0.0
    %877 = vmatpush1.msra.mxu0 0.0
    %878 = vmatprep.subr.mxu0 0.0
    %879 = vmatpush1.msra.mxu0 0.0
    %880 = vmatprep.subr.mxu0 0.0
    %881 = vmatpush1.msra.mxu0 0.0
    %882 = vmatprep.subr.mxu0 0.0
    %883 = vmatpush1.msra.mxu0 0.0
    %884 = vmatprep.subr.mxu0 0.0
    %885 = vmatpush1.msra.mxu0 0.0
    %886 = vmatprep.subr.mxu0 0.0
    %887 = vmatpush1.msra.mxu0 0.0
    %888 = vmatprep.subr.mxu0 0.0
    %889 = vmatpush1.msra.mxu0 0.0
    %890 = vmatprep.subr.mxu0 0.0
    %891 = vmatpush1.msra.mxu0 0.0
    %892 = vmatprep.subr.mxu0 0.0
    %893 = vmatpush1.msra.mxu0 0.0
    %894 = vmatprep.subr.mxu0 0.0
    %895 = vmatpush1.msra.mxu0 0.0
    %896 = vmatprep.subr.mxu0 0.0
    %897 = vmatpush1.msra.mxu0 0.0
    %898 = vmatprep.subr.mxu0 0.0
    %899 = vmatpush1.msra.mxu0 0.0
    %900 = vmatprep.subr.mxu0 0.0
    %901 = vmatpush1.msra.mxu0 0.0
    %902 = vmatprep.subr.mxu0 0.0
    %903 = vmatpush1.msra.mxu0 0.0
    %904 = vmatprep.subr.mxu0 0.0
    %905 = vmatpush1.msra.mxu0 0.0
    %906 = vmatprep.subr.mxu0 0.0
    %907 = vmatpush1.msra.mxu0 0.0
    %908 = vmatprep.subr.mxu0 0.0
    %909 = vmatpush1.msra.mxu0 0.0
    %910 = vmatprep.subr.mxu0 0.0
    %911 = vmatpush1.msra.mxu0 0.0
    %912 = vmatprep.subr.mxu0 0.0
    %913 = vmatpush1.msra.mxu0 0.0
    %914 = vmatprep.subr.mxu0 0.0
    %915 = vmatpush1.msra.mxu0 0.0
    %916 = vmatprep.subr.mxu0 0.0
    %917 = vmatpush1.msra.mxu0 0.0
    %918 = vmatprep.subr.mxu0 0.0
    %919 = vmatpush1.msra.mxu0 0.0
    %920 = vmatprep.mubr.f32.mxu0 0.0
    %v921 = vand.u32 %v546, 4294901760
    %v922 = vsub.f32 %v546, %v921
    %v923 = vand.u32 %v922, 4294901760
    %924 = vmatmul.mubr.f32.gmra.mrb[0].mxu0 %v923
    %v925 = vpop.f32.mrb[0].mxu0
    %v926 = vadd.f32 %v843, %v925
    %v927 = vpop.f32.mrb[0].mxu0
    %928 = vdwg.mxu0
    %929 = vmatprep.subr.mxu0 0.0
    %v930 = vand.u32 %v68, 4294901760
    %v931 = vsub.f32 %v68, %v930
    %v932 = vand.u32 %v931, 4294901760
    %933 = vmatpush1.msra.mxu0 %v932
    %934 = vmatprep.subr.mxu0 0.0
    %v935 = vand.u32 %v69, 4294901760
    %v936 = vsub.f32 %v69, %v935
    %v937 = vand.u32 %v936, 4294901760
    %938 = vmatpush1.msra.mxu0 %v937
    %939 = vmatprep.subr.mxu0 0.0
    %v940 = vand.u32 %v70, 4294901760
    %v941 = vsub.f32 %v70, %v940
    %v942 = vand.u32 %v941, 4294901760
    %943 = vmatpush1.msra.mxu0 %v942
    %944 = vmatprep.subr.mxu0 0.0
    %v945 = vand.u32 %v71, 4294901760
    %v946 = vsub.f32 %v71, %v945
    %v947 = vand.u32 %v946, 4294901760
    %948 = vmatpush1.msra.mxu0 %v947
    %949 = vmatprep.subr.mxu0 0.0
    %v950 = vand.u32 %v72, 4294901760
    %v951 = vsub.f32 %v72, %v950
    %v952 = vand.u32 %v951, 4294901760
    %953 = vmatpush1.msra.mxu0 %v952
    %954 = vmatprep.subr.mxu0 0.0
    %v955 = vand.u32 %v73, 4294901760
    %v956 = vsub.f32 %v73, %v955
    %v957 = vand.u32 %v956, 4294901760
    %958 = vmatpush1.msra.mxu0 %v957
    %959 = vmatprep.subr.mxu0 0.0
    %v960 = vand.u32 %v74, 4294901760
    %v961 = vsub.f32 %v74, %v960
    %v962 = vand.u32 %v961, 4294901760
    %963 = vmatpush1.msra.mxu0 %v962
    %964 = vmatprep.subr.mxu0 0.0
    %v965 = vand.u32 %v75, 4294901760
    %v966 = vsub.f32 %v75, %v965
    %v967 = vand.u32 %v966, 4294901760
    %968 = vmatpush1.msra.mxu0 %v967
    %969 = vmatprep.subr.mxu0 0.0
    %v970 = vand.u32 %v76, 4294901760
    %v971 = vsub.f32 %v76, %v970
    %v972 = vand.u32 %v971, 4294901760
    %973 = vmatpush1.msra.mxu0 %v972
    %974 = vmatprep.subr.mxu0 0.0
    %v975 = vand.u32 %v77, 4294901760
    %v976 = vsub.f32 %v77, %v975
    %v977 = vand.u32 %v976, 4294901760
    %978 = vmatpush1.msra.mxu0 %v977
    %979 = vmatprep.subr.mxu0 0.0
    %980 = vmatpush1.msra.mxu0 0.0
    %981 = vmatprep.subr.mxu0 0.0
    %982 = vmatpush1.msra.mxu0 0.0
    %983 = vmatprep.subr.mxu0 0.0
    %984 = vmatpush1.msra.mxu0 0.0
    %985 = vmatprep.subr.mxu0 0.0
    %986 = vmatpush1.msra.mxu0 0.0
    %987 = vmatprep.subr.mxu0 0.0
    %988 = vmatpush1.msra.mxu0 0.0
    %989 = vmatprep.subr.mxu0 0.0
    %990 = vmatpush1.msra.mxu0 0.0
    %991 = vmatprep.subr.mxu0 0.0
    %992 = vmatpush1.msra.mxu0 0.0
    %993 = vmatprep.subr.mxu0 0.0
    %994 = vmatpush1.msra.mxu0 0.0
    %995 = vmatprep.subr.mxu0 0.0
    %996 = vmatpush1.msra.mxu0 0.0
    %997 = vmatprep.subr.mxu0 0.0
    %998 = vmatpush1.msra.mxu0 0.0
    %999 = vmatprep.subr.mxu0 0.0
    %1000 = vmatpush1.msra.mxu0 0.0
    %1001 = vmatprep.subr.mxu0 0.0
    %1002 = vmatpush1.msra.mxu0 0.0
    %1003 = vmatprep.subr.mxu0 0.0
    %1004 = vmatpush1.msra.mxu0 0.0
    %1005 = vmatprep.subr.mxu0 0.0
    %1006 = vmatpush1.msra.mxu0 0.0
    %1007 = vmatprep.subr.mxu0 0.0
    %1008 = vmatpush1.msra.mxu0 0.0
    %1009 = vmatprep.subr.mxu0 0.0
    %1010 = vmatpush1.msra.mxu0 0.0
    %1011 = vmatprep.subr.mxu0 0.0
    %1012 = vmatpush1.msra.mxu0 0.0
    %1013 = vmatprep.subr.mxu0 0.0
    %1014 = vmatpush1.msra.mxu0 0.0
    %1015 = vmatprep.subr.mxu0 0.0
    %1016 = vmatpush1.msra.mxu0 0.0
    %1017 = vmatprep.subr.mxu0 0.0
    %1018 = vmatpush1.msra.mxu0 0.0
    %1019 = vmatprep.subr.mxu0 0.0
    %1020 = vmatpush1.msra.mxu0 0.0
    %1021 = vmatprep.subr.mxu0 0.0
    %1022 = vmatpush1.msra.mxu0 0.0
    %1023 = vmatprep.mubr.f32.mxu0 0.0
    %v1024 = vand.u32 %v546, 4294901760
    %1025 = vmatmul.mubr.f32.gmra.mrb[0].mxu0 %v1024
    %v1026 = vpop.f32.mrb[0].mxu0
    %v1027 = vadd.f32 %v926, %v1026
    %v1028 = vpop.f32.mrb[0].mxu0
    %1029 = vdwg.mxu0
    %1030 = vmatprep.subr.mxu0 0.0
    %v1031 = vand.u32 %v68, 4294901760
    %1032 = vmatpush1.msra.mxu0 %v1031
    %1033 = vmatprep.subr.mxu0 0.0
    %v1034 = vand.u32 %v69, 4294901760
    %1035 = vmatpush1.msra.mxu0 %v1034
    %1036 = vmatprep.subr.mxu0 0.0
    %v1037 = vand.u32 %v70, 4294901760
    %1038 = vmatpush1.msra.mxu0 %v1037
    %1039 = vmatprep.subr.mxu0 0.0
    %v1040 = vand.u32 %v71, 4294901760
    %1041 = vmatpush1.msra.mxu0 %v1040
    %1042 = vmatprep.subr.mxu0 0.0
    %v1043 = vand.u32 %v72, 4294901760
    %1044 = vmatpush1.msra.mxu0 %v1043
    %1045 = vmatprep.subr.mxu0 0.0
    %v1046 = vand.u32 %v73, 4294901760
    %1047 = vmatpush1.msra.mxu0 %v1046
    %1048 = vmatprep.subr.mxu0 0.0
    %v1049 = vand.u32 %v74, 4294901760
    %1050 = vmatpush1.msra.mxu0 %v1049
    %1051 = vmatprep.subr.mxu0 0.0
    %v1052 = vand.u32 %v75, 4294901760
    %1053 = vmatpush1.msra.mxu0 %v1052
    %1054 = vmatprep.subr.mxu0 0.0
    %v1055 = vand.u32 %v76, 4294901760
    %1056 = vmatpush1.msra.mxu0 %v1055
    %1057 = vmatprep.subr.mxu0 0.0
    %v1058 = vand.u32 %v77, 4294901760
    %1059 = vmatpush1.msra.mxu0 %v1058
    %1060 = vmatprep.subr.mxu0 0.0
    %1061 = vmatpush1.msra.mxu0 0.0
    %1062 = vmatprep.subr.mxu0 0.0
    %1063 = vmatpush1.msra.mxu0 0.0
    %1064 = vmatprep.subr.mxu0 0.0
    %1065 = vmatpush1.msra.mxu0 0.0
    %1066 = vmatprep.subr.mxu0 0.0
    %1067 = vmatpush1.msra.mxu0 0.0
    %1068 = vmatprep.subr.mxu0 0.0
    %1069 = vmatpush1.msra.mxu0 0.0
    %1070 = vmatprep.subr.mxu0 0.0
    %1071 = vmatpush1.msra.mxu0 0.0
    %1072 = vmatprep.subr.mxu0 0.0
    %1073 = vmatpush1.msra.mxu0 0.0
    %1074 = vmatprep.subr.mxu0 0.0
    %1075 = vmatpush1.msra.mxu0 0.0
    %1076 = vmatprep.subr.mxu0 0.0
    %1077 = vmatpush1.msra.mxu0 0.0
    %1078 = vmatprep.subr.mxu0 0.0
    %1079 = vmatpush1.msra.mxu0 0.0
    %1080 = vmatprep.subr.mxu0 0.0
    %1081 = vmatpush1.msra.mxu0 0.0
    %1082 = vmatprep.subr.mxu0 0.0
    %1083 = vmatpush1.msra.mxu0 0.0
    %1084 = vmatprep.subr.mxu0 0.0
    %1085 = vmatpush1.msra.mxu0 0.0
    %1086 = vmatprep.subr.mxu0 0.0
    %1087 = vmatpush1.msra.mxu0 0.0
    %1088 = vmatprep.subr.mxu0 0.0
    %1089 = vmatpush1.msra.mxu0 0.0
    %1090 = vmatprep.subr.mxu0 0.0
    %1091 = vmatpush1.msra.mxu0 0.0
    %1092 = vmatprep.subr.mxu0 0.0
    %1093 = vmatpush1.msra.mxu0 0.0
    %1094 = vmatprep.subr.mxu0 0.0
    %1095 = vmatpush1.msra.mxu0 0.0
    %1096 = vmatprep.subr.mxu0 0.0
    %1097 = vmatpush1.msra.mxu0 0.0
    %1098 = vmatprep.subr.mxu0 0.0
    %1099 = vmatpush1.msra.mxu0 0.0
    %1100 = vmatprep.subr.mxu0 0.0
    %1101 = vmatpush1.msra.mxu0 0.0
    %1102 = vmatprep.subr.mxu0 0.0
    %1103 = vmatpush1.msra.mxu0 0.0
    %1104 = vmatprep.mubr.f32.mxu0 0.0
    %v1105 = vand.u32 %v546, 4294901760
    %1106 = vmatmul.mubr.f32.gmra.mrb[0].mxu0 %v1105
    %v1107 = vpop.f32.mrb[0].mxu0
    %v1108 = vadd.f32 %v1027, %v1107
    %v1109 = vpop.f32.mrb[0].mxu0
    %1110 = vdwg.mxu0
    %v1111 = vld [vmem:[%s5] sm:$0x7]
    %v1112 = vlaneseq
    %v1113 = vshrl.u32 %v1112, 7
    %v1114 = vsub.s32 0, %v1113
    %v1115 = vrot.slane %v1111, %v1114
    %v1116 = vadd.f32 %v1108, %v1115
    %v1117 = vrot.slane %v1116, 4
    %v1118 = vadd.f32 %v1116, %v1117
    %v1119 = vrot.slane %v1118, 2
    %v1120 = vadd.f32 %v1118, %v1119
    %v1121 = vrot.slane %v1120, 1
    %v1122 = vadd.f32 %v1120, %v1121
    %v1123 = vrcp.pop 8.0
    %v1124 = vmul.f32 %v1122, %v1123
    %v1125 = vsub.f32 %v1116, %v1124
    %v1126 = vmul.f32 %v1125, %v1125
    %v1127 = vrot.slane %v1126, 4
    %v1128 = vadd.f32 %v1126, %v1127
    %v1129 = vrot.slane %v1128, 2
    %v1130 = vadd.f32 %v1128, %v1129
    %v1131 = vrot.slane %v1130, 1
    %v1132 = vadd.f32 %v1130, %v1131
    %v1133 = vmul.f32 %v1132, %v1123
    %v1134 = vadd.f32 %v1133, 1e-05
    %v1135 = vrsqrt.pop %v1134
    %v1136 = vmul.f32 %v1125, %v1135
    %v1137 = vlaneseq
    %v1138 = vshrl.u32 %v1137, 7
    %v1139 = vsub.s32 1, %v1138
    %v1140 = vrot.slane %v1111, %v1139
    %v1141 = vmul.f32 %v1136, %v1140
    %v1142 = vlaneseq
    %v1143 = vshrl.u32 %v1142, 7
    %v1144 = vsub.s32 2, %v1143
    %v1145 = vrot.slane %v1111, %v1144
    %v1146 = vadd.f32 %v1141, %v1145
    %v1147 = vmax.f32 %v1146, 0.0
    %v1148 = vld [vmem:[#allocation5] sm:$0xff]
    %v1149 = vld [vmem:[#allocation5 + $0x8] sm:$0xff]
    %v1150 = vld [vmem:[#allocation5 + $0x10] sm:$0xff]
    %v1151 = vld [vmem:[#allocation5 + $0x18] sm:$0xff]
    %v1152 = vld [vmem:[#allocation5 + $0x20] sm:$0xff]
    %v1153 = vld [vmem:[#allocation5 + $0x28] sm:$0xff]
    %s1154 = scalar_lea.vmem %s5, 4
    %v1155 = vld [vmem:[%s1154] sm:$0x7]
    %v1156 = vlaneseq
    %v1157 = vshrl.u32 %v1156, 7
    %v1158 = vsub.s32 0, %v1157
    %v1159 = vrot.slane %v1155, %v1158
    %vm1160 = vcmask 392192
    %v1162 = vsel %vm1160, %v1147, 0
    %1164 = vmatprep.subr.mxu0 0.0
    %v1165 = vand.u32 %v1148, 4294901760
    %1166 = vmatpush1.msra.mxu0 %v1165
    %1167 = vmatprep.subr.mxu0 0.0
    %v1168 = vand.u32 %v1149, 4294901760
    %1169 = vmatpush1.msra.mxu0 %v1168
    %1170 = vmatprep.subr.mxu0 0.0
    %v1171 = vand.u32 %v1150, 4294901760
    %1172 = vmatpush1.msra.mxu0 %v1171
    %1173 = vmatprep.subr.mxu0 0.0
    %v1174 = vand.u32 %v1151, 4294901760
    %1175 = vmatpush1.msra.mxu0 %v1174
    %1176 = vmatprep.subr.mxu0 0.0
    %v1177 = vand.u32 %v1152, 4294901760
    %1178 = vmatpush1.msra.mxu0 %v1177
    %1179 = vmatprep.subr.mxu0 0.0
    %v1180 = vand.u32 %v1153, 4294901760
    %1181 = vmatpush1.msra.mxu0 %v1180
    %1182 = vmatprep.subr.mxu0 0.0
    %1183 = vmatpush1.msra.mxu0 0.0
    %1184 = vmatprep.subr.mxu0 0.0
    %1185 = vmatpush1.msra.mxu0 0.0
    %1186 = vmatprep.subr.mxu0 0.0
    %1187 = vmatpush1.msra.mxu0 0.0
    %1188 = vmatprep.subr.mxu0 0.0
    %1189 = vmatpush1.msra.mxu0 0.0
    %1190 = vmatprep.subr.mxu0 0.0
    %1191 = vmatpush1.msra.mxu0 0.0
    %1192 = vmatprep.subr.mxu0 0.0
    %1193 = vmatpush1.msra.mxu0 0.0
    %1194 = vmatprep.subr.mxu0 0.0
    %1195 = vmatpush1.msra.mxu0 0.0
    %1196 = vmatprep.subr.mxu0 0.0
    %1197 = vmatpush1.msra.mxu0 0.0
    %1198 = vmatprep.subr.mxu0 0.0
    %1199 = vmatpush1.msra.mxu0 0.0
    %1200 = vmatprep.subr.mxu0 0.0
    %1201 = vmatpush1.msra.mxu0 0.0
    %1202 = vmatprep.subr.mxu0 0.0
    %1203 = vmatpush1.msra.mxu0 0.0
    %1204 = vmatprep.subr.mxu0 0.0
    %1205 = vmatpush1.msra.mxu0 0.0
    %1206 = vmatprep.subr.mxu0 0.0
    %1207 = vmatpush1.msra.mxu0 0.0
    %1208 = vmatprep.subr.mxu0 0.0
    %1209 = vmatpush1.msra.mxu0 0.0
    %1210 = vmatprep.subr.mxu0 0.0
    %1211 = vmatpush1.msra.mxu0 0.0
    %1212 = vmatprep.subr.mxu0 0.0
    %1213 = vmatpush1.msra.mxu0 0.0
    %1214 = vmatprep.subr.mxu0 0.0
    %1215 = vmatpush1.msra.mxu0 0.0
    %1216 = vmatprep.subr.mxu0 0.0
    %1217 = vmatpush1.msra.mxu0 0.0
    %1218 = vmatprep.subr.mxu0 0.0
    %1219 = vmatpush1.msra.mxu0 0.0
    %1220 = vmatprep.subr.mxu0 0.0
    %1221 = vmatpush1.msra.mxu0 0.0
    %1222 = vmatprep.subr.mxu0 0.0
    %1223 = vmatpush1.msra.mxu0 0.0
    %1224 = vmatprep.subr.mxu0 0.0
    %1225 = vmatpush1.msra.mxu0 0.0
    %1226 = vmatprep.subr.mxu0 0.0
    %1227 = vmatpush1.msra.mxu0 0.0
    %1228 = vmatprep.subr.mxu0 0.0
    %1229 = vmatpush1.msra.mxu0 0.0
    %1230 = vmatprep.subr.mxu0 0.0
    %1231 = vmatpush1.msra.mxu0 0.0
    %1232 = vmatprep.subr.mxu0 0.0
    %1233 = vmatpush1.msra.mxu0 0.0
    %1234 = vmatprep.mubr.f32.mxu0 0.0
    %v1235 = vand.u32 %v1162, 4294901760
    %v1236 = vsub.f32 %v1162, %v1235
    %v1237 = vand.u32 %v1236, 4294901760
    %v1238 = vsub.f32 %v1236, %v1237
    %v1239 = vand.u32 %v1238, 4294901760
    %1240 = vmatmul.mubr.f32.gmra.mrb[0].mxu0 %v1239
    %v1241 = vpop.f32.mrb[0].mxu0
    %v1242 = vadd.f32 %v1159, %v1241
    %v1243 = vpop.f32.mrb[0].mxu0
    %1244 = vdwg.mxu0
    %1245 = vmatprep.subr.mxu0 0.0
    %v1246 = vand.u32 %v1148, 4294901760
    %v1247 = vsub.f32 %v1148, %v1246
    %v1248 = vand.u32 %v1247, 4294901760
    %v1249 = vsub.f32 %v1247, %v1248
    %v1250 = vand.u32 %v1249, 4294901760
    %1251 = vmatpush1.msra.mxu0 %v1250
    %1252 = vmatprep.subr.mxu0 0.0
    %v1253 = vand.u32 %v1149, 4294901760
    %v1254 = vsub.f32 %v1149, %v1253
    %v1255 = vand.u32 %v1254, 4294901760
    %v1256 = vsub.f32 %v1254, %v1255
    %v1257 = vand.u32 %v1256, 4294901760
    %1258 = vmatpush1.msra.mxu0 %v1257
    %1259 = vmatprep.subr.mxu0 0.0
    %v1260 = vand.u32 %v1150, 4294901760
    %v1261 = vsub.f32 %v1150, %v1260
    %v1262 = vand.u32 %v1261, 4294901760
    %v1263 = vsub.f32 %v1261, %v1262
    %v1264 = vand.u32 %v1263, 4294901760
    %1265 = vmatpush1.msra.mxu0 %v1264
    %1266 = vmatprep.subr.mxu0 0.0
    %v1267 = vand.u32 %v1151, 4294901760
    %v1268 = vsub.f32 %v1151, %v1267
    %v1269 = vand.u32 %v1268, 4294901760
    %v1270 = vsub.f32 %v1268, %v1269
    %v1271 = vand.u32 %v1270, 4294901760
    %1272 = vmatpush1.msra.mxu0 %v1271
    %1273 = vmatprep.subr.mxu0 0.0
    %v1274 = vand.u32 %v1152, 4294901760
    %v1275 = vsub.f32 %v1152, %v1274
    %v1276 = vand.u32 %v1275, 4294901760
    %v1277 = vsub.f32 %v1275, %v1276
    %v1278 = vand.u32 %v1277, 4294901760
    %1279 = vmatpush1.msra.mxu0 %v1278
    %1280 = vmatprep.subr.mxu0 0.0
    %v1281 = vand.u32 %v1153, 4294901760
    %v1282 = vsub.f32 %v1153, %v1281
    %v1283 = vand.u32 %v1282, 4294901760
    %v1284 = vsub.f32 %v1282, %v1283
    %v1285 = vand.u32 %v1284, 4294901760
    %1286 = vmatpush1.msra.mxu0 %v1285
    %1287 = vmatprep.subr.mxu0 0.0
    %1288 = vmatpush1.msra.mxu0 0.0
    %1289 = vmatprep.subr.mxu0 0.0
    %1290 = vmatpush1.msra.mxu0 0.0
    %1291 = vmatprep.subr.mxu0 0.0
    %1292 = vmatpush1.msra.mxu0 0.0
    %1293 = vmatprep.subr.mxu0 0.0
    %1294 = vmatpush1.msra.mxu0 0.0
    %1295 = vmatprep.subr.mxu0 0.0
    %1296 = vmatpush1.msra.mxu0 0.0
    %1297 = vmatprep.subr.mxu0 0.0
    %1298 = vmatpush1.msra.mxu0 0.0
    %1299 = vmatprep.subr.mxu0 0.0
    %1300 = vmatpush1.msra.mxu0 0.0
    %1301 = vmatprep.subr.mxu0 0.0
    %1302 = vmatpush1.msra.mxu0 0.0
    %1303 = vmatprep.subr.mxu0 0.0
    %1304 = vmatpush1.msra.mxu0 0.0
    %1305 = vmatprep.subr.mxu0 0.0
    %1306 = vmatpush1.msra.mxu0 0.0
    %1307 = vmatprep.subr.mxu0 0.0
    %1308 = vmatpush1.msra.mxu0 0.0
    %1309 = vmatprep.subr.mxu0 0.0
    %1310 = vmatpush1.msra.mxu0 0.0
    %1311 = vmatprep.subr.mxu0 0.0
    %1312 = vmatpush1.msra.mxu0 0.0
    %1313 = vmatprep.subr.mxu0 0.0
    %1314 = vmatpush1.msra.mxu0 0.0
    %1315 = vmatprep.subr.mxu0 0.0
    %1316 = vmatpush1.msra.mxu0 0.0
    %1317 = vmatprep.subr.mxu0 0.0
    %1318 = vmatpush1.msra.mxu0 0.0
    %1319 = vmatprep.subr.mxu0 0.0
    %1320 = vmatpush1.msra.mxu0 0.0
    %1321 = vmatprep.subr.mxu0 0.0
    %1322 = vmatpush1.msra.mxu0 0.0
    %1323 = vmatprep.subr.mxu0 0.0
    %1324 = vmatpush1.msra.mxu0 0.0
    %1325 = vmatprep.subr.mxu0 0.0
    %1326 = vmatpush1.msra.mxu0 0.0
    %1327 = vmatprep.subr.mxu0 0.0
    %1328 = vmatpush1.msra.mxu0 0.0
    %1329 = vmatprep.subr.mxu0 0.0
    %1330 = vmatpush1.msra.mxu0 0.0
    %1331 = vmatprep.subr.mxu0 0.0
    %1332 = vmatpush1.msra.mxu0 0.0
    %1333 = vmatprep.subr.mxu0 0.0
    %1334 = vmatpush1.msra.mxu0 0.0
    %1335 = vmatprep.subr.mxu0 0.0
    %1336 = vmatpush1.msra.mxu0 0.0
    %1337 = vmatprep.subr.mxu0 0.0
    %1338 = vmatpush1.msra.mxu0 0.0
    %1339 = vmatprep.mubr.f32.mxu0 0.0
    %v1340 = vand.u32 %v1162, 4294901760
    %1341 = vmatmul.mubr.f32.gmra.mrb[0].mxu0 %v1340
    %v1342 = vpop.f32.mrb[0].mxu0
    %v1343 = vadd.f32 %v1242, %v1342
    %v1344 = vpop.f32.mrb[0].mxu0
    %1345 = vdwg.mxu0
    %1346 = vmatprep.subr.mxu0 0.0
    %v1347 = vand.u32 %v1148, 4294901760
    %v1348 = vsub.f32 %v1148, %v1347
    %1349 = vmatpush1.msra.mxu0 %v1348
    %1350 = vmatprep.subr.mxu0 0.0
    %v1351 = vand.u32 %v1149, 4294901760
    %v1352 = vsub.f32 %v1149, %v1351
    %1353 = vmatpush1.msra.mxu0 %v1352
    %1354 = vmatprep.subr.mxu0 0.0
    %v1355 = vand.u32 %v1150, 4294901760
    %v1356 = vsub.f32 %v1150, %v1355
    %1357 = vmatpush1.msra.mxu0 %v1356
    %1358 = vmatprep.subr.mxu0 0.0
    %v1359 = vand.u32 %v1151, 4294901760
    %v1360 = vsub.f32 %v1151, %v1359
    %1361 = vmatpush1.msra.mxu0 %v1360
    %1362 = vmatprep.subr.mxu0 0.0
    %v1363 = vand.u32 %v1152, 4294901760
    %v1364 = vsub.f32 %v1152, %v1363
    %1365 = vmatpush1.msra.mxu0 %v1364
    %1366 = vmatprep.subr.mxu0 0.0
    %v1367 = vand.u32 %v1153, 4294901760
    %v1368 = vsub.f32 %v1153, %v1367
    %1369 = vmatpush1.msra.mxu0 %v1368
    %1370 = vmatprep.subr.mxu0 0.0
    %1371 = vmatpush1.msra.mxu0 0.0
    %1372 = vmatprep.subr.mxu0 0.0
    %1373 = vmatpush1.msra.mxu0 0.0
    %1374 = vmatprep.subr.mxu0 0.0
    %1375 = vmatpush1.msra.mxu0 0.0
    %1376 = vmatprep.subr.mxu0 0.0
    %1377 = vmatpush1.msra.mxu0 0.0
    %1378 = vmatprep.subr.mxu0 0.0
    %1379 = vmatpush1.msra.mxu0 0.0
    %1380 = vmatprep.subr.mxu0 0.0
    %1381 = vmatpush1.msra.mxu0 0.0
    %1382 = vmatprep.subr.mxu0 0.0
    %1383 = vmatpush1.msra.mxu0 0.0
    %1384 = vmatprep.subr.mxu0 0.0
    %1385 = vmatpush1.msra.mxu0 0.0
    %1386 = vmatprep.subr.mxu0 0.0
    %1387 = vmatpush1.msra.mxu0 0.0
    %1388 = vmatprep.subr.mxu0 0.0
    %1389 = vmatpush1.msra.mxu0 0.0
    %1390 = vmatprep.subr.mxu0 0.0
    %1391 = vmatpush1.msra.mxu0 0.0
    %1392 = vmatprep.subr.mxu0 0.0
    %1393 = vmatpush1.msra.mxu0 0.0
    %1394 = vmatprep.subr.mxu0 0.0
    %1395 = vmatpush1.msra.mxu0 0.0
    %1396 = vmatprep.subr.mxu0 0.0
    %1397 = vmatpush1.msra.mxu0 0.0
    %1398 = vmatprep.subr.mxu0 0.0
    %1399 = vmatpush1.msra.mxu0 0.0
    %1400 = vmatprep.subr.mxu0 0.0
    %1401 = vmatpush1.msra.mxu0 0.0
    %1402 = vmatprep.subr.mxu0 0.0
    %1403 = vmatpush1.msra.mxu0 0.0
    %1404 = vmatprep.subr.mxu0 0.0
    %1405 = vmatpush1.msra.mxu0 0.0
    %1406 = vmatprep.subr.mxu0 0.0
    %1407 = vmatpush1.msra.mxu0 0.0
    %1408 = vmatprep.subr.mxu0 0.0
    %1409 = vmatpush1.msra.mxu0 0.0
    %1410 = vmatprep.subr.mxu0 0.0
    %1411 = vmatpush1.msra.mxu0 0.0
    %1412 = vmatprep.subr.mxu0 0.0
    %1413 = vmatpush1.msra.mxu0 0.0
    %1414 = vmatprep.subr.mxu0 0.0
    %1415 = vmatpush1.msra.mxu0 0.0
    %1416 = vmatprep.subr.mxu0 0.0
    %1417 = vmatpush1.msra.mxu0 0.0
    %1418 = vmatprep.subr.mxu0 0.0
    %1419 = vmatpush1.msra.mxu0 0.0
    %1420 = vmatprep.subr.mxu0 0.0
    %1421 = vmatpush1.msra.mxu0 0.0
    %1422 = vmatprep.mubr.f32.mxu0 0.0
    %v1423 = vand.u32 %v1162, 4294901760
    %v1424 = vsub.f32 %v1162, %v1423
    %1425 = vmatmul.mubr.f32.gmra.mrb[0].mxu0 %v1424
    %v1426 = vpop.f32.mrb[0].mxu0
    %v1427 = vadd.f32 %v1343, %v1426
    %v1428 = vpop.f32.mrb[0].mxu0
    %1429 = vdwg.mxu0
    %1430 = vmatprep.subr.mxu0 0.0
    %v1431 = vand.u32 %v1148, 4294901760
    %1432 = vmatpush1.msra.mxu0 %v1431
    %1433 = vmatprep.subr.mxu0 0.0
    %v1434 = vand.u32 %v1149, 4294901760
    %1435 = vmatpush1.msra.mxu0 %v1434
    %1436 = vmatprep.subr.mxu0 0.0
    %v1437 = vand.u32 %v1150, 4294901760
    %1438 = vmatpush1.msra.mxu0 %v1437
    %1439 = vmatprep.subr.mxu0 0.0
    %v1440 = vand.u32 %v1151, 4294901760
    %1441 = vmatpush1.msra.mxu0 %v1440
    %1442 = vmatprep.subr.mxu0 0.0
    %v1443 = vand.u32 %v1152, 4294901760
    %1444 = vmatpush1.msra.mxu0 %v1443
    %1445 = vmatprep.subr.mxu0 0.0
    %v1446 = vand.u32 %v1153, 4294901760
    %1447 = vmatpush1.msra.mxu0 %v1446
    %1448 = vmatprep.subr.mxu0 0.0
    %1449 = vmatpush1.msra.mxu0 0.0
    %1450 = vmatprep.subr.mxu0 0.0
    %1451 = vmatpush1.msra.mxu0 0.0
    %1452 = vmatprep.subr.mxu0 0.0
    %1453 = vmatpush1.msra.mxu0 0.0
    %1454 = vmatprep.subr.mxu0 0.0
    %1455 = vmatpush1.msra.mxu0 0.0
    %1456 = vmatprep.subr.mxu0 0.0
    %1457 = vmatpush1.msra.mxu0 0.0
    %1458 = vmatprep.subr.mxu0 0.0
    %1459 = vmatpush1.msra.mxu0 0.0
    %1460 = vmatprep.subr.mxu0 0.0
    %1461 = vmatpush1.msra.mxu0 0.0
    %1462 = vmatprep.subr.mxu0 0.0
    %1463 = vmatpush1.msra.mxu0 0.0
    %1464 = vmatprep.subr.mxu0 0.0
    %1465 = vmatpush1.msra.mxu0 0.0
    %1466 = vmatprep.subr.mxu0 0.0
    %1467 = vmatpush1.msra.mxu0 0.0
    %1468 = vmatprep.subr.mxu0 0.0
    %1469 = vmatpush1.msra.mxu0 0.0
    %1470 = vmatprep.subr.mxu0 0.0
    %1471 = vmatpush1.msra.mxu0 0.0
    %1472 = vmatprep.subr.mxu0 0.0
    %1473 = vmatpush1.msra.mxu0 0.0
    %1474 = vmatprep.subr.mxu0 0.0
    %1475 = vmatpush1.msra.mxu0 0.0
    %1476 = vmatprep.subr.mxu0 0.0
    %1477 = vmatpush1.msra.mxu0 0.0
    %1478 = vmatprep.subr.mxu0 0.0
    %1479 = vmatpush1.msra.mxu0 0.0
    %1480 = vmatprep.subr.mxu0 0.0
    %1481 = vmatpush1.msra.mxu0 0.0
    %1482 = vmatprep.subr.mxu0 0.0
    %1483 = vmatpush1.msra.mxu0 0.0
    %1484 = vmatprep.subr.mxu0 0.0
    %1485 = vmatpush1.msra.mxu0 0.0
    %1486 = vmatprep.subr.mxu0 0.0
    %1487 = vmatpush1.msra.mxu0 0.0
    %1488 = vmatprep.subr.mxu0 0.0
    %1489 = vmatpush1.msra.mxu0 0.0
    %1490 = vmatprep.subr.mxu0 0.0
    %1491 = vmatpush1.msra.mxu0 0.0
    %1492 = vmatprep.subr.mxu0 0.0
    %1493 = vmatpush1.msra.mxu0 0.0
    %1494 = vmatprep.subr.mxu0 0.0
    %1495 = vmatpush1.msra.mxu0 0.0
    %1496 = vmatprep.subr.mxu0 0.0
    %1497 = vmatpush1.msra.mxu0 0.0
    %1498 = vmatprep.subr.mxu0 0.0
    %1499 = vmatpush1.msra.mxu0 0.0
    %1500 = vmatprep.mubr.f32.mxu0 0.0
    %v1501 = vand.u32 %v1162, 4294901760
    %v1502 = vsub.f32 %v1162, %v1501
    %v1503 = vand.u32 %v1502, 4294901760
    %1504 = vmatmul.mubr.f32.gmra.mrb[0].mxu0 %v1503
    %v1505 = vpop.f32.mrb[0].mxu0
    %v1506 = vadd.f32 %v1427, %v1505
    %v1507 = vpop.f32.mrb[0].mxu0
    %1508 = vdwg.mxu0
    %1509 = vmatprep.subr.mxu0 0.0
    %v1510 = vand.u32 %v1148, 4294901760
    %v1511 = vsub.f32 %v1148, %v1510
    %v1512 = vand.u32 %v1511, 4294901760
    %1513 = vmatpush1.msra.mxu0 %v1512
    %1514 = vmatprep.subr.mxu0 0.0
    %v1515 = vand.u32 %v1149, 4294901760
    %v1516 = vsub.f32 %v1149, %v1515
    %v1517 = vand.u32 %v1516, 4294901760
    %1518 = vmatpush1.msra.mxu0 %v1517
    %1519 = vmatprep.subr.mxu0 0.0
    %v1520 = vand.u32 %v1150, 4294901760
    %v1521 = vsub.f32 %v1150, %v1520
    %v1522 = vand.u32 %v1521, 4294901760
    %1523 = vmatpush1.msra.mxu0 %v1522
    %1524 = vmatprep.subr.mxu0 0.0
    %v1525 = vand.u32 %v1151, 4294901760
    %v1526 = vsub.f32 %v1151, %v1525
    %v1527 = vand.u32 %v1526, 4294901760
    %1528 = vmatpush1.msra.mxu0 %v1527
    %1529 = vmatprep.subr.mxu0 0.0
    %v1530 = vand.u32 %v1152, 4294901760
    %v1531 = vsub.f32 %v1152, %v1530
    %v1532 = vand.u32 %v1531, 4294901760
    %1533 = vmatpush1.msra.mxu0 %v1532
    %1534 = vmatprep.subr.mxu0 0.0
    %v1535 = vand.u32 %v1153, 4294901760
    %v1536 = vsub.f32 %v1153, %v1535
    %v1537 = vand.u32 %v1536, 4294901760
    %1538 = vmatpush1.msra.mxu0 %v1537
    %1539 = vmatprep.subr.mxu0 0.0
    %1540 = vmatpush1.msra.mxu0 0.0
    %1541 = vmatprep.subr.mxu0 0.0
    %1542 = vmatpush1.msra.mxu0 0.0
    %1543 = vmatprep.subr.mxu0 0.0
    %1544 = vmatpush1.msra.mxu0 0.0
    %1545 = vmatprep.subr.mxu0 0.0
    %1546 = vmatpush1.msra.mxu0 0.0
    %1547 = vmatprep.subr.mxu0 0.0
    %1548 = vmatpush1.msra.mxu0 0.0
    %1549 = vmatprep.subr.mxu0 0.0
    %1550 = vmatpush1.msra.mxu0 0.0
    %1551 = vmatprep.subr.mxu0 0.0
    %1552 = vmatpush1.msra.mxu0 0.0
    %1553 = vmatprep.subr.mxu0 0.0
    %1554 = vmatpush1.msra.mxu0 0.0
    %1555 = vmatprep.subr.mxu0 0.0
    %1556 = vmatpush1.msra.mxu0 0.0
    %1557 = vmatprep.subr.mxu0 0.0
    %1558 = vmatpush1.msra.mxu0 0.0
    %1559 = vmatprep.subr.mxu0 0.0
    %1560 = vmatpush1.msra.mxu0 0.0
    %1561 = vmatprep.subr.mxu0 0.0
    %1562 = vmatpush1.msra.mxu0 0.0
    %1563 = vmatprep.subr.mxu0 0.0
    %1564 = vmatpush1.msra.mxu0 0.0
    %1565 = vmatprep.subr.mxu0 0.0
    %1566 = vmatpush1.msra.mxu0 0.0
    %1567 = vmatprep.subr.mxu0 0.0
    %1568 = vmatpush1.msra.mxu0 0.0
    %1569 = vmatprep.subr.mxu0 0.0
    %1570 = vmatpush1.msra.mxu0 0.0
    %1571 = vmatprep.subr.mxu0 0.0
    %1572 = vmatpush1.msra.mxu0 0.0
    %1573 = vmatprep.subr.mxu0 0.0
    %1574 = vmatpush1.msra.mxu0 0.0
    %1575 = vmatprep.subr.mxu0 0.0
    %1576 = vmatpush1.msra.mxu0 0.0
    %1577 = vmatprep.subr.mxu0 0.0
    %1578 = vmatpush1.msra.mxu0 0.0
    %1579 = vmatprep.subr.mxu0 0.0
    %1580 = vmatpush1.msra.mxu0 0.0
    %1581 = vmatprep.subr.mxu0 0.0
    %1582 = vmatpush1.msra.mxu0 0.0
    %1583 = vmatprep.subr.mxu0 0.0
    %1584 = vmatpush1.msra.mxu0 0.0
    %1585 = vmatprep.subr.mxu0 0.0
    %1586 = vmatpush1.msra.mxu0 0.0
    %1587 = vmatprep.subr.mxu0 0.0
    %1588 = vmatpush1.msra.mxu0 0.0
    %1589 = vmatprep.subr.mxu0 0.0
    %1590 = vmatpush1.msra.mxu0 0.0
    %1591 = vmatprep.mubr.f32.mxu0 0.0
    %v1592 = vand.u32 %v1162, 4294901760
    %1593 = vmatmul.mubr.f32.gmra.mrb[0].mxu0 %v1592
    %v1594 = vpop.f32.mrb[0].mxu0
    %v1595 = vadd.f32 %v1506, %v1594
    %v1596 = vpop.f32.mrb[0].mxu0
    %1597 = vdwg.mxu0
    %1598 = vmatprep.subr.mxu0 0.0
    %v1599 = vand.u32 %v1148, 4294901760
    %1600 = vmatpush1.msra.mxu0 %v1599
    %1601 = vmatprep.subr.mxu0 0.0
    %v1602 = vand.u32 %v1149, 4294901760
    %1603 = vmatpush1.msra.mxu0 %v1602
    %1604 = vmatprep.subr.mxu0 0.0
    %v1605 = vand.u32 %v1150, 4294901760
    %1606 = vmatpush1.msra.mxu0 %v1605
    %1607 = vmatprep.subr.mxu0 0.0
    %v1608 = vand.u32 %v1151, 4294901760
    %1609 = vmatpush1.msra.mxu0 %v1608
    %1610 = vmatprep.subr.mxu0 0.0
    %v1611 = vand.u32 %v1152, 4294901760
    %1612 = vmatpush1.msra.mxu0 %v1611
    %1613 = vmatprep.subr.mxu0 0.0
    %v1614 = vand.u32 %v1153, 4294901760
    %1615 = vmatpush1.msra.mxu0 %v1614
    %1616 = vmatprep.subr.mxu0 0.0
    %1617 = vmatpush1.msra.mxu0 0.0
    %1618 = vmatprep.subr.mxu0 0.0
    %1619 = vmatpush1.msra.mxu0 0.0
    %1620 = vmatprep.subr.mxu0 0.0
    %1621 = vmatpush1.msra.mxu0 0.0
    %1622 = vmatprep.subr.mxu0 0.0
    %1623 = vmatpush1.msra.mxu0 0.0
    %1624 = vmatprep.subr.mxu0 0.0
    %1625 = vmatpush1.msra.mxu0 0.0
    %1626 = vmatprep.subr.mxu0 0.0
    %1627 = vmatpush1.msra.mxu0 0.0
    %1628 = vmatprep.subr.mxu0 0.0
    %1629 = vmatpush1.msra.mxu0 0.0
    %1630 = vmatprep.subr.mxu0 0.0
    %1631 = vmatpush1.msra.mxu0 0.0
    %1632 = vmatprep.subr.mxu0 0.0
    %1633 = vmatpush1.msra.mxu0 0.0
    %1634 = vmatprep.subr.mxu0 0.0
    %1635 = vmatpush1.msra.mxu0 0.0
    %1636 = vmatprep.subr.mxu0 0.0
    %1637 = vmatpush1.msra.mxu0 0.0
    %1638 = vmatprep.subr.mxu0 0.0
    %1639 = vmatpush1.msra.mxu0 0.0
    %1640 = vmatprep.subr.mxu0 0.0
    %1641 = vmatpush1.msra.mxu0 0.0
    %1642 = vmatprep.subr.mxu0 0.0
    %1643 = vmatpush1.msra.mxu0 0.0
    %1644 = vmatprep.subr.mxu0 0.0
    %1645 = vmatpush1.msra.mxu0 0.0
    %1646 = vmatprep.subr.mxu0 0.0
    %1647 = vmatpush1.msra.mxu0 0.0
    %1648 = vmatprep.subr.mxu0 0.0
    %1649 = vmatpush1.msra.mxu0 0.0
    %1650 = vmatprep.subr.mxu0 0.0
    %1651 = vmatpush1.msra.mxu0 0.0
    %1652 = vmatprep.subr.mxu0 0.0
    %1653 = vmatpush1.msra.mxu0 0.0
    %1654 = vmatprep.subr.mxu0 0.0
    %1655 = vmatpush1.msra.mxu0 0.0
    %1656 = vmatprep.subr.mxu0 0.0
    %1657 = vmatpush1.msra.mxu0 0.0
    %1658 = vmatprep.subr.mxu0 0.0
    %1659 = vmatpush1.msra.mxu0 0.0
    %1660 = vmatprep.subr.mxu0 0.0
    %1661 = vmatpush1.msra.mxu0 0.0
    %1662 = vmatprep.subr.mxu0 0.0
    %1663 = vmatpush1.msra.mxu0 0.0
    %1664 = vmatprep.subr.mxu0 0.0
    %1665 = vmatpush1.msra.mxu0 0.0
    %1666 = vmatprep.subr.mxu0 0.0
    %1667 = vmatpush1.msra.mxu0 0.0
    %1668 = vmatprep.mubr.f32.mxu0 0.0
    %v1669 = vand.u32 %v1162, 4294901760
    %1670 = vmatmul.mubr.f32.gmra.mrb[0].mxu0 %v1669
    %v1671 = vpop.f32.mrb[0].mxu0
    %v1672 = vadd.f32 %v1595, %v1671
    %v1673 = vpop.f32.mrb[0].mxu0
    %1674 = vdwg.mxu0
    %v1675 = vrot.slane %v1672, 4
    %v1676 = vadd.f32 %v1672, %v1675
    %v1677 = vrot.slane %v1676, 2
    %v1678 = vadd.f32 %v1676, %v1677
    %v1679 = vrot.slane %v1678, 1
    %v1680 = vadd.f32 %v1678, %v1679
    %v1681 = vmul.f32 %v1680, %v1123
    %v1682 = vsub.f32 %v1672, %v1681
    %v1683 = vmul.f32 %v1682, %v1682
    %v1684 = vrot.slane %v1683, 4
    %v1685 = vadd.f32 %v1683, %v1684
    %v1686 = vrot.slane %v1685, 2
    %v1687 = vadd.f32 %v1685, %v1686
    %v1688 = vrot.slane %v1687, 1
    %v1689 = vadd.f32 %v1687, %v1688
    %v1690 = vmul.f32 %v1689, %v1123
    %v1691 = vadd.f32 %v1690, 1e-05
    %v1692 = vrsqrt.pop %v1691
    %v1693 = vmul.f32 %v1682, %v1692
    %v1694 = vlaneseq
    %v1695 = vshrl.u32 %v1694, 7
    %v1696 = vsub.s32 1, %v1695
    %v1697 = vrot.slane %v1155, %v1696
    %v1698 = vmul.f32 %v1693, %v1697
    %v1699 = vlaneseq
    %v1700 = vshrl.u32 %v1699, 7
    %v1701 = vsub.s32 2, %v1700
    %v1702 = vrot.slane %v1155, %v1701
    %v1703 = vadd.f32 %v1698, %v1702
    %v1704 = vmax.f32 %v1703, 0.0
    %v1705 = vld [vmem:[#allocation5 + $0x30] sm:$0xff]
    %v1706 = vld [vmem:[#allocation5 + $0x38] sm:$0xff]
    %v1707 = vld [vmem:[#allocation5 + $0x40] sm:$0xff]
    %v1708 = vld [vmem:[#allocation5 + $0x48] sm:$0xff]
    %s1709 = scalar_lea.vmem %s5, 8
    %v1710 = vld [vmem:[%s1709] sm:$0x7]
    %v1711 = vlaneseq
    %v1712 = vshrl.u32 %v1711, 7
    %v1713 = vsub.s32 0, %v1712
    %v1714 = vrot.slane %v1710, %v1713
    %vm1715 = vcmask 261120
    %v1717 = vsel %vm1715, %v1704, 0
    %1719 = vmatprep.subr.mxu0 0.0
    %v1720 = vand.u32 %v1705, 4294901760
    %1721 = vmatpush1.msra.mxu0 %v1720
    %1722 = vmatprep.subr.mxu0 0.0
    %v1723 = vand.u32 %v1706, 4294901760
    %1724 = vmatpush1.msra.mxu0 %v1723
    %1725 = vmatprep.subr.mxu0 0.0
    %v1726 = vand.u32 %v1707, 4294901760
    %1727 = vmatpush1.msra.mxu0 %v1726
    %1728 = vmatprep.subr.mxu0 0.0
    %v1729 = vand.u32 %v1708, 4294901760
    %1730 = vmatpush1.msra.mxu0 %v1729
    %1731 = vmatprep.subr.mxu0 0.0
    %1732 = vmatpush1.msra.mxu0 0.0
    %1733 = vmatprep.subr.mxu0 0.0
    %1734 = vmatpush1.msra.mxu0 0.0
    %1735 = vmatprep.subr.mxu0 0.0
    %1736 = vmatpush1.msra.mxu0 0.0
    %1737 = vmatprep.subr.mxu0 0.0
    %1738 = vmatpush1.msra.mxu0 0.0
    %1739 = vmatprep.subr.mxu0 0.0
    %1740 = vmatpush1.msra.mxu0 0.0
    %1741 = vmatprep.subr.mxu0 0.0
    %1742 = vmatpush1.msra.mxu0 0.0
    %1743 = vmatprep.subr.mxu0 0.0
    %1744 = vmatpush1.msra.mxu0 0.0
    %1745 = vmatprep.subr.mxu0 0.0
    %1746 = vmatpush1.msra.mxu0 0.0
    %1747 = vmatprep.subr.mxu0 0.0
    %1748 = vmatpush1.msra.mxu0 0.0
    %1749 = vmatprep.subr.mxu0 0.0
    %1750 = vmatpush1.msra.mxu0 0.0
    %1751 = vmatprep.subr.mxu0 0.0
    %1752 = vmatpush1.msra.mxu0 0.0
    %1753 = vmatprep.subr.mxu0 0.0
    %1754 = vmatpush1.msra.mxu0 0.0
    %1755 = vmatprep.subr.mxu0 0.0
    %1756 = vmatpush1.msra.mxu0 0.0
    %1757 = vmatprep.subr.mxu0 0.0
    %1758 = vmatpush1.msra.mxu0 0.0
    %1759 = vmatprep.subr.mxu0 0.0
    %1760 = vmatpush1.msra.mxu0 0.0
    %1761 = vmatprep.subr.mxu0 0.0
    %1762 = vmatpush1.msra.mxu0 0.0
    %1763 = vmatprep.subr.mxu0 0.0
    %1764 = vmatpush1.msra.mxu0 0.0
    %1765 = vmatprep.subr.mxu0 0.0
    %1766 = vmatpush1.msra.mxu0 0.0
    %1767 = vmatprep.subr.mxu0 0.0
    %1768 = vmatpush1.msra.mxu0 0.0
    %1769 = vmatprep.subr.mxu0 0.0
    %1770 = vmatpush1.msra.mxu0 0.0
    %1771 = vmatprep.subr.mxu0 0.0
    %1772 = vmatpush1.msra.mxu0 0.0
    %1773 = vmatprep.subr.mxu0 0.0
    %1774 = vmatpush1.msra.mxu0 0.0
    %1775 = vmatprep.subr.mxu0 0.0
    %1776 = vmatpush1.msra.mxu0 0.0
    %1777 = vmatprep.subr.mxu0 0.0
    %1778 = vmatpush1.msra.mxu0 0.0
    %1779 = vmatprep.subr.mxu0 0.0
    %1780 = vmatpush1.msra.mxu0 0.0
    %1781 = vmatprep.subr.mxu0 0.0
    %1782 = vmatpush1.msra.mxu0 0.0
    %1783 = vmatprep.subr.mxu0 0.0
    %1784 = vmatpush1.msra.mxu0 0.0
    %1785 = vmatprep.subr.mxu0 0.0
    %1786 = vmatpush1.msra.mxu0 0.0
    %1787 = vmatprep.mubr.f32.mxu0 0.0
    %v1788 = vand.u32 %v1717, 4294901760
    %v1789 = vsub.f32 %v1717, %v1788
    %v1790 = vand.u32 %v1789, 4294901760
    %v1791 = vsub.f32 %v1789, %v1790
    %v1792 = vand.u32 %v1791, 4294901760
    %1793 = vmatmul.mubr.f32.gmra.mrb[0].mxu0 %v1792
    %v1794 = vpop.f32.mrb[0].mxu0
    %v1795 = vadd.f32 %v1714, %v1794
    %v1796 = vpop.f32.mrb[0].mxu0
    %1797 = vdwg.mxu0
    %1798 = vmatprep.subr.mxu0 0.0
    %v1799 = vand.u32 %v1705, 4294901760
    %v1800 = vsub.f32 %v1705, %v1799
    %v1801 = vand.u32 %v1800, 4294901760
    %v1802 = vsub.f32 %v1800, %v1801
    %v1803 = vand.u32 %v1802, 4294901760
    %1804 = vmatpush1.msra.mxu0 %v1803
    %1805 = vmatprep.subr.mxu0 0.0
    %v1806 = vand.u32 %v1706, 4294901760
    %v1807 = vsub.f32 %v1706, %v1806
    %v1808 = vand.u32 %v1807, 4294901760
    %v1809 = vsub.f32 %v1807, %v1808
    %v1810 = vand.u32 %v1809, 4294901760
    %1811 = vmatpush1.msra.mxu0 %v1810
    %1812 = vmatprep.subr.mxu0 0.0
    %v1813 = vand.u32 %v1707, 4294901760
    %v1814 = vsub.f32 %v1707, %v1813
    %v1815 = vand.u32 %v1814, 4294901760
    %v1816 = vsub.f32 %v1814, %v1815
    %v1817 = vand.u32 %v1816, 4294901760
    %1818 = vmatpush1.msra.mxu0 %v1817
    %1819 = vmatprep.subr.mxu0 0.0
    %v1820 = vand.u32 %v1708, 4294901760
    %v1821 = vsub.f32 %v1708, %v1820
    %v1822 = vand.u32 %v1821, 4294901760
    %v1823 = vsub.f32 %v1821, %v1822
    %v1824 = vand.u32 %v1823, 4294901760
    %1825 = vmatpush1.msra.mxu0 %v1824
    %1826 = vmatprep.subr.mxu0 0.0
    %1827 = vmatpush1.msra.mxu0 0.0
    %1828 = vmatprep.subr.mxu0 0.0
    %1829 = vmatpush1.msra.mxu0 0.0
    %1830 = vmatprep.subr.mxu0 0.0
    %1831 = vmatpush1.msra.mxu0 0.0
    %1832 = vmatprep.subr.mxu0 0.0
    %1833 = vmatpush1.msra.mxu0 0.0
    %1834 = vmatprep.subr.mxu0 0.0
    %1835 = vmatpush1.msra.mxu0 0.0
    %1836 = vmatprep.subr.mxu0 0.0
    %1837 = vmatpush1.msra.mxu0 0.0
    %1838 = vmatprep.subr.mxu0 0.0
    %1839 = vmatpush1.msra.mxu0 0.0
    %1840 = vmatprep.subr.mxu0 0.0
    %1841 = vmatpush1.msra.mxu0 0.0
    %1842 = vmatprep.subr.mxu0 0.0
    %1843 = vmatpush1.msra.mxu0 0.0
    %1844 = vmatprep.subr.mxu0 0.0
    %1845 = vmatpush1.msra.mxu0 0.0
    %1846 = vmatprep.subr.mxu0 0.0
    %1847 = vmatpush1.msra.mxu0 0.0
    %1848 = vmatprep.subr.mxu0 0.0
    %1849 = vmatpush1.msra.mxu0 0.0
    %1850 = vmatprep.subr.mxu0 0.0
    %1851 = vmatpush1.msra.mxu0 0.0
    %1852 = vmatprep.subr.mxu0 0.0
    %1853 = vmatpush1.msra.mxu0 0.0
    %1854 = vmatprep.subr.mxu0 0.0
    %1855 = vmatpush1.msra.mxu0 0.0
    %1856 = vmatprep.subr.mxu0 0.0
    %1857 = vmatpush1.msra.mxu0 0.0
    %1858 = vmatprep.subr.mxu0 0.0
    %1859 = vmatpush1.msra.mxu0 0.0
    %1860 = vmatprep.subr.mxu0 0.0
    %1861 = vmatpush1.msra.mxu0 0.0
    %1862 = vmatprep.subr.mxu0 0.0
    %1863 = vmatpush1.msra.mxu0 0.0
    %1864 = vmatprep.subr.mxu0 0.0
    %1865 = vmatpush1.msra.mxu0 0.0
    %1866 = vmatprep.subr.mxu0 0.0
    %1867 = vmatpush1.msra.mxu0 0.0
    %1868 = vmatprep.subr.mxu0 0.0
    %1869 = vmatpush1.msra.mxu0 0.0
    %1870 = vmatprep.subr.mxu0 0.0
    %1871 = vmatpush1.msra.mxu0 0.0
    %1872 = vmatprep.subr.mxu0 0.0
    %1873 = vmatpush1.msra.mxu0 0.0
    %1874 = vmatprep.subr.mxu0 0.0
    %1875 = vmatpush1.msra.mxu0 0.0
    %1876 = vmatprep.subr.mxu0 0.0
    %1877 = vmatpush1.msra.mxu0 0.0
    %1878 = vmatprep.subr.mxu0 0.0
    %1879 = vmatpush1.msra.mxu0 0.0
    %1880 = vmatprep.subr.mxu0 0.0
    %1881 = vmatpush1.msra.mxu0 0.0
    %1882 = vmatprep.mubr.f32.mxu0 0.0
    %v1883 = vand.u32 %v1717, 4294901760
    %1884 = vmatmul.mubr.f32.gmra.mrb[0].mxu0 %v1883
    %v1885 = vpop.f32.mrb[0].mxu0
    %v1886 = vadd.f32 %v1795, %v1885
    %v1887 = vpop.f32.mrb[0].mxu0
    %1888 = vdwg.mxu0
    %1889 = vmatprep.subr.mxu0 0.0
    %v1890 = vand.u32 %v1705, 4294901760
    %v1891 = vsub.f32 %v1705, %v1890
    %1892 = vmatpush1.msra.mxu0 %v1891
    %1893 = vmatprep.subr.mxu0 0.0
    %v1894 = vand.u32 %v1706, 4294901760
    %v1895 = vsub.f32 %v1706, %v1894
    %1896 = vmatpush1.msra.mxu0 %v1895
    %1897 = vmatprep.subr.mxu0 0.0
    %v1898 = vand.u32 %v1707, 4294901760
    %v1899 = vsub.f32 %v1707, %v1898
    %1900 = vmatpush1.msra.mxu0 %v1899
    %1901 = vmatprep.subr.mxu0 0.0
    %v1902 = vand.u32 %v1708, 4294901760
    %v1903 = vsub.f32 %v1708, %v1902
    %1904 = vmatpush1.msra.mxu0 %v1903
    %1905 = vmatprep.subr.mxu0 0.0
    %1906 = vmatpush1.msra.mxu0 0.0
    %1907 = vmatprep.subr.mxu0 0.0
    %1908 = vmatpush1.msra.mxu0 0.0
    %1909 = vmatprep.subr.mxu0 0.0
    %1910 = vmatpush1.msra.mxu0 0.0
    %1911 = vmatprep.subr.mxu0 0.0
    %1912 = vmatpush1.msra.mxu0 0.0
    %1913 = vmatprep.subr.mxu0 0.0
    %1914 = vmatpush1.msra.mxu0 0.0
    %1915 = vmatprep.subr.mxu0 0.0
    %1916 = vmatpush1.msra.mxu0 0.0
    %1917 = vmatprep.subr.mxu0 0.0
    %1918 = vmatpush1.msra.mxu0 0.0
    %1919 = vmatprep.subr.mxu0 0.0
    %1920 = vmatpush1.msra.mxu0 0.0
    %1921 = vmatprep.subr.mxu0 0.0
    %1922 = vmatpush1.msra.mxu0 0.0
    %1923 = vmatprep.subr.mxu0 0.0
    %1924 = vmatpush1.msra.mxu0 0.0
    %1925 = vmatprep.subr.mxu0 0.0
    %1926 = vmatpush1.msra.mxu0 0.0
    %1927 = vmatprep.subr.mxu0 0.0
    %1928 = vmatpush1.msra.mxu0 0.0
    %1929 = vmatprep.subr.mxu0 0.0
    %1930 = vmatpush1.msra.mxu0 0.0
    %1931 = vmatprep.subr.mxu0 0.0
    %1932 = vmatpush1.msra.mxu0 0.0
    %1933 = vmatprep.subr.mxu0 0.0
    %1934 = vmatpush1.msra.mxu0 0.0
    %1935 = vmatprep.subr.mxu0 0.0
    %1936 = vmatpush1.msra.mxu0 0.0
    %1937 = vmatprep.subr.mxu0 0.0
    %1938 = vmatpush1.msra.mxu0 0.0
    %1939 = vmatprep.subr.mxu0 0.0
    %1940 = vmatpush1.msra.mxu0 0.0
    %1941 = vmatprep.subr.mxu0 0.0
    %1942 = vmatpush1.msra.mxu0 0.0
    %1943 = vmatprep.subr.mxu0 0.0
    %1944 = vmatpush1.msra.mxu0 0.0
    %1945 = vmatprep.subr.mxu0 0.0
    %1946 = vmatpush1.msra.mxu0 0.0
    %1947 = vmatprep.subr.mxu0 0.0
    %1948 = vmatpush1.msra.mxu0 0.0
    %1949 = vmatprep.subr.mxu0 0.0
    %1950 = vmatpush1.msra.mxu0 0.0
    %1951 = vmatprep.subr.mxu0 0.0
    %1952 = vmatpush1.msra.mxu0 0.0
    %1953 = vmatprep.subr.mxu0 0.0
    %1954 = vmatpush1.msra.mxu0 0.0
    %1955 = vmatprep.subr.mxu0 0.0
    %1956 = vmatpush1.msra.mxu0 0.0
    %1957 = vmatprep.subr.mxu0 0.0
    %1958 = vmatpush1.msra.mxu0 0.0
    %1959 = vmatprep.subr.mxu0 0.0
    %1960 = vmatpush1.msra.mxu0 0.0
    %1961 = vmatprep.mubr.f32.mxu0 0.0
    %v1962 = vand.u32 %v1717, 4294901760
    %v1963 = vsub.f32 %v1717, %v1962
    %1964 = vmatmul.mubr.f32.gmra.mrb[0].mxu0 %v1963
    %v1965 = vpop.f32.mrb[0].mxu0
    %v1966 = vadd.f32 %v1886, %v1965
    %v1967 = vpop.f32.mrb[0].mxu0
    %1968 = vdwg.mxu0
    %1969 = vmatprep.subr.mxu0 0.0
    %v1970 = vand.u32 %v1705, 4294901760
    %1971 = vmatpush1.msra.mxu0 %v1970
    %1972 = vmatprep.subr.mxu0 0.0
    %v1973 = vand.u32 %v1706, 4294901760
    %1974 = vmatpush1.msra.mxu0 %v1973
    %1975 = vmatprep.subr.mxu0 0.0
    %v1976 = vand.u32 %v1707, 4294901760
    %1977 = vmatpush1.msra.mxu0 %v1976
    %1978 = vmatprep.subr.mxu0 0.0
    %v1979 = vand.u32 %v1708, 4294901760
    %1980 = vmatpush1.msra.mxu0 %v1979
    %1981 = vmatprep.subr.mxu0 0.0
    %1982 = vmatpush1.msra.mxu0 0.0
    %1983 = vmatprep.subr.mxu0 0.0
    %1984 = vmatpush1.msra.mxu0 0.0
    %1985 = vmatprep.subr.mxu0 0.0
    %1986 = vmatpush1.msra.mxu0 0.0
    %1987 = vmatprep.subr.mxu0 0.0
    %1988 = vmatpush1.msra.mxu0 0.0
    %1989 = vmatprep.subr.mxu0 0.0
    %1990 = vmatpush1.msra.mxu0 0.0
    %1991 = vmatprep.subr.mxu0 0.0
    %1992 = vmatpush1.msra.mxu0 0.0
    %1993 = vmatprep.subr.mxu0 0.0
    %1994 = vmatpush1.msra.mxu0 0.0
    %1995 = vmatprep.subr.mxu0 0.0
    %1996 = vmatpush1.msra.mxu0 0.0
    %1997 = vmatprep.subr.mxu0 0.0
    %1998 = vmatpush1.msra.mxu0 0.0
    %1999 = vmatprep.subr.mxu0 0.0
    %2000 = vmatpush1.msra.mxu0 0.0
    %2001 = vmatprep.subr.mxu0 0.0
    %2002 = vmatpush1.msra.mxu0 0.0
    %2003 = vmatprep.subr.mxu0 0.0
    %2004 = vmatpush1.msra.mxu0 0.0
    %2005 = vmatprep.subr.mxu0 0.0
    %2006 = vmatpush1.msra.mxu0 0.0
    %2007 = vmatprep.subr.mxu0 0.0
    %2008 = vmatpush1.msra.mxu0 0.0
    %2009 = vmatprep.subr.mxu0 0.0
    %2010 = vmatpush1.msra.mxu0 0.0
    %2011 = vmatprep.subr.mxu0 0.0
    %2012 = vmatpush1.msra.mxu0 0.0
    %2013 = vmatprep.subr.mxu0 0.0
    %2014 = vmatpush1.msra.mxu0 0.0
    %2015 = vmatprep.subr.mxu0 0.0
    %2016 = vmatpush1.msra.mxu0 0.0
    %2017 = vmatprep.subr.mxu0 0.0
    %2018 = vmatpush1.msra.mxu0 0.0
    %2019 = vmatprep.subr.mxu0 0.0
    %2020 = vmatpush1.msra.mxu0 0.0
    %2021 = vmatprep.subr.mxu0 0.0
    %2022 = vmatpush1.msra.mxu0 0.0
    %2023 = vmatprep.subr.mxu0 0.0
    %2024 = vmatpush1.msra.mxu0 0.0
    %2025 = vmatprep.subr.mxu0 0.0
    %2026 = vmatpush1.msra.mxu0 0.0
    %2027 = vmatprep.subr.mxu0 0.0
    %2028 = vmatpush1.msra.mxu0 0.0
    %2029 = vmatprep.subr.mxu0 0.0
    %2030 = vmatpush1.msra.mxu0 0.0
    %2031 = vmatprep.subr.mxu0 0.0
    %2032 = vmatpush1.msra.mxu0 0.0
    %2033 = vmatprep.subr.mxu0 0.0
    %2034 = vmatpush1.msra.mxu0 0.0
    %2035 = vmatprep.subr.mxu0 0.0
    %2036 = vmatpush1.msra.mxu0 0.0
    %2037 = vmatprep.mubr.f32.mxu0 0.0
    %v2038 = vand.u32 %v1717, 4294901760
    %v2039 = vsub.f32 %v1717, %v2038
    %v2040 = vand.u32 %v2039, 4294901760
    %2041 = vmatmul.mubr.f32.gmra.mrb[0].mxu0 %v2040
    %v2042 = vpop.f32.mrb[0].mxu0
    %v2043 = vadd.f32 %v1966, %v2042
    %v2044 = vpop.f32.mrb[0].mxu0
    %2045 = vdwg.mxu0
    %2046 = vmatprep.subr.mxu0 0.0
    %v2047 = vand.u32 %v1705, 4294901760
    %v2048 = vsub.f32 %v1705, %v2047
    %v2049 = vand.u32 %v2048, 4294901760
    %2050 = vmatpush1.msra.mxu0 %v2049
    %2051 = vmatprep.subr.mxu0 0.0
    %v2052 = vand.u32 %v1706, 4294901760
    %v2053 = vsub.f32 %v1706, %v2052
    %v2054 = vand.u32 %v2053, 4294901760
    %2055 = vmatpush1.msra.mxu0 %v2054
    %2056 = vmatprep.subr.mxu0 0.0
    %v2057 = vand.u32 %v1707, 4294901760
    %v2058 = vsub.f32 %v1707, %v2057
    %v2059 = vand.u32 %v2058, 4294901760
    %2060 = vmatpush1.msra.mxu0 %v2059
    %2061 = vmatprep.subr.mxu0 0.0
    %v2062 = vand.u32 %v1708, 4294901760
    %v2063 = vsub.f32 %v1708, %v2062
    %v2064 = vand.u32 %v2063, 4294901760
    %2065 = vmatpush1.msra.mxu0 %v2064
    %2066 = vmatprep.subr.mxu0 0.0
    %2067 = vmatpush1.msra.mxu0 0.0
    %2068 = vmatprep.subr.mxu0 0.0
    %2069 = vmatpush1.msra.mxu0 0.0
    %2070 = vmatprep.subr.mxu0 0.0
    %2071 = vmatpush1.msra.mxu0 0.0
    %2072 = vmatprep.subr.mxu0 0.0
    %2073 = vmatpush1.msra.mxu0 0.0
    %2074 = vmatprep.subr.mxu0 0.0
    %2075 = vmatpush1.msra.mxu0 0.0
    %2076 = vmatprep.subr.mxu0 0.0
    %2077 = vmatpush1.msra.mxu0 0.0
    %2078 = vmatprep.subr.mxu0 0.0
    %2079 = vmatpush1.msra.mxu0 0.0
    %2080 = vmatprep.subr.mxu0 0.0
    %2081 = vmatpush1.msra.mxu0 0.0
    %2082 = vmatprep.subr.mxu0 0.0
    %2083 = vmatpush1.msra.mxu0 0.0
    %2084 = vmatprep.subr.mxu0 0.0
    %2085 = vmatpush1.msra.mxu0 0.0
    %2086 = vmatprep.subr.mxu0 0.0
    %2087 = vmatpush1.msra.mxu0 0.0
    %2088 = vmatprep.subr.mxu0 0.0
    %2089 = vmatpush1.msra.mxu0 0.0
    %2090 = vmatprep.subr.mxu0 0.0
    %2091 = vmatpush1.msra.mxu0 0.0
    %2092 = vmatprep.subr.mxu0 0.0
    %2093 = vmatpush1.msra.mxu0 0.0
    %2094 = vmatprep.subr.mxu0 0.0
    %2095 = vmatpush1.msra.mxu0 0.0
    %2096 = vmatprep.subr.mxu0 0.0
    %2097 = vmatpush1.msra.mxu0 0.0
    %2098 = vmatprep.subr.mxu0 0.0
    %2099 = vmatpush1.msra.mxu0 0.0
    %2100 = vmatprep.subr.mxu0 0.0
    %2101 = vmatpush1.msra.mxu0 0.0
    %2102 = vmatprep.subr.mxu0 0.0
    %2103 = vmatpush1.msra.mxu0 0.0
    %2104 = vmatprep.subr.mxu0 0.0
    %2105 = vmatpush1.msra.mxu0 0.0
    %2106 = vmatprep.subr.mxu0 0.0
    %2107 = vmatpush1.msra.mxu0 0.0
    %2108 = vmatprep.subr.mxu0 0.0
    %2109 = vmatpush1.msra.mxu0 0.0
    %2110 = vmatprep.subr.mxu0 0.0
    %2111 = vmatpush1.msra.mxu0 0.0
    %2112 = vmatprep.subr.mxu0 0.0
    %2113 = vmatpush1.msra.mxu0 0.0
    %2114 = vmatprep.subr.mxu0 0.0
    %2115 = vmatpush1.msra.mxu0 0.0
    %2116 = vmatprep.subr.mxu0 0.0
    %2117 = vmatpush1.msra.mxu0 0.0
    %2118 = vmatprep.subr.mxu0 0.0
    %2119 = vmatpush1.msra.mxu0 0.0
    %2120 = vmatprep.subr.mxu0 0.0
    %2121 = vmatpush1.msra.mxu0 0.0
    %2122 = vmatprep.mubr.f32.mxu0 0.0
    %v2123 = vand.u32 %v1717, 4294901760
    %2124 = vmatmul.mubr.f32.gmra.mrb[0].mxu0 %v2123
    %v2125 = vpop.f32.mrb[0].mxu0
    %v2126 = vadd.f32 %v2043, %v2125
    %v2127 = vpop.f32.mrb[0].mxu0
    %2128 = vdwg.mxu0
    %2129 = vmatprep.subr.mxu0 0.0
    %v2130 = vand.u32 %v1705, 4294901760
    %2131 = vmatpush1.msra.mxu0 %v2130
    %2132 = vmatprep.subr.mxu0 0.0
    %v2133 = vand.u32 %v1706, 4294901760
    %2134 = vmatpush1.msra.mxu0 %v2133
    %2135 = vmatprep.subr.mxu0 0.0
    %v2136 = vand.u32 %v1707, 4294901760
    %2137 = vmatpush1.msra.mxu0 %v2136
    %2138 = vmatprep.subr.mxu0 0.0
    %v2139 = vand.u32 %v1708, 4294901760
    %2140 = vmatpush1.msra.mxu0 %v2139
    %2141 = vmatprep.subr.mxu0 0.0
    %2142 = vmatpush1.msra.mxu0 0.0
    %2143 = vmatprep.subr.mxu0 0.0
    %2144 = vmatpush1.msra.mxu0 0.0
    %2145 = vmatprep.subr.mxu0 0.0
    %2146 = vmatpush1.msra.mxu0 0.0
    %2147 = vmatprep.subr.mxu0 0.0
    %2148 = vmatpush1.msra.mxu0 0.0
    %2149 = vmatprep.subr.mxu0 0.0
    %2150 = vmatpush1.msra.mxu0 0.0
    %2151 = vmatprep.subr.mxu0 0.0
    %2152 = vmatpush1.msra.mxu0 0.0
    %2153 = vmatprep.subr.mxu0 0.0
    %2154 = vmatpush1.msra.mxu0 0.0
    %2155 = vmatprep.subr.mxu0 0.0
    %2156 = vmatpush1.msra.mxu0 0.0
    %2157 = vmatprep.subr.mxu0 0.0
    %2158 = vmatpush1.msra.mxu0 0.0
    %2159 = vmatprep.subr.mxu0 0.0
    %2160 = vmatpush1.msra.mxu0 0.0
    %2161 = vmatprep.subr.mxu0 0.0
    %2162 = vmatpush1.msra.mxu0 0.0
    %2163 = vmatprep.subr.mxu0 0.0
    %2164 = vmatpush1.msra.mxu0 0.0
    %2165 = vmatprep.subr.mxu0 0.0
    %2166 = vmatpush1.msra.mxu0 0.0
    %2167 = vmatprep.subr.mxu0 0.0
    %2168 = vmatpush1.msra.mxu0 0.0
    %2169 = vmatprep.subr.mxu0 0.0
    %2170 = vmatpush1.msra.mxu0 0.0
    %2171 = vmatprep.subr.mxu0 0.0
    %2172 = vmatpush1.msra.mxu0 0.0
    %2173 = vmatprep.subr.mxu0 0.0
    %2174 = vmatpush1.msra.mxu0 0.0
    %2175 = vmatprep.subr.mxu0 0.0
    %2176 = vmatpush1.msra.mxu0 0.0
    %2177 = vmatprep.subr.mxu0 0.0
    %2178 = vmatpush1.msra.mxu0 0.0
    %2179 = vmatprep.subr.mxu0 0.0
    %2180 = vmatpush1.msra.mxu0 0.0
    %2181 = vmatprep.subr.mxu0 0.0
    %2182 = vmatpush1.msra.mxu0 0.0
    %2183 = vmatprep.subr.mxu0 0.0
    %2184 = vmatpush1.msra.mxu0 0.0
    %2185 = vmatprep.subr.mxu0 0.0
    %2186 = vmatpush1.msra.mxu0 0.0
    %2187 = vmatprep.subr.mxu0 0.0
    %2188 = vmatpush1.msra.mxu0 0.0
    %2189 = vmatprep.subr.mxu0 0.0
    %2190 = vmatpush1.msra.mxu0 0.0
    %2191 = vmatprep.subr.mxu0 0.0
    %2192 = vmatpush1.msra.mxu0 0.0
    %2193 = vmatprep.subr.mxu0 0.0
    %2194 = vmatpush1.msra.mxu0 0.0
    %2195 = vmatprep.subr.mxu0 0.0
    %2196 = vmatpush1.msra.mxu0 0.0
    %2197 = vmatprep.mubr.f32.mxu0 0.0
    %v2198 = vand.u32 %v1717, 4294901760
    %2199 = vmatmul.mubr.f32.gmra.mrb[0].mxu0 %v2198
    %v2200 = vpop.f32.mrb[0].mxu0
    %v2201 = vadd.f32 %v2126, %v2200
    %v2202 = vpop.f32.mrb[0].mxu0
    %2203 = vdwg.mxu0
    %v2204 = vrot.slane %v2201, 4
    %v2205 = vadd.f32 %v2201, %v2204
    %v2206 = vrot.slane %v2205, 2
    %v2207 = vadd.f32 %v2205, %v2206
    %v2208 = vrot.slane %v2207, 1
    %v2209 = vadd.f32 %v2207, %v2208
    %v2210 = vmul.f32 %v2209, %v1123
    %v2211 = vsub.f32 %v2201, %v2210
    %v2212 = vmul.f32 %v2211, %v2211
    %v2213 = vrot.slane %v2212, 4
    %v2214 = vadd.f32 %v2212, %v2213
    %v2215 = vrot.slane %v2214, 2
    %v2216 = vadd.f32 %v2214, %v2215
    %v2217 = vrot.slane %v2216, 1
    %v2218 = vadd.f32 %v2216, %v2217
    %v2219 = vmul.f32 %v2218, %v1123
    %v2220 = vadd.f32 %v2219, 1e-05
    %v2221 = vrsqrt.pop %v2220
    %v2222 = vmul.f32 %v2211, %v2221
    %v2223 = vlaneseq
    %v2224 = vshrl.u32 %v2223, 7
    %v2225 = vsub.s32 1, %v2224
    %v2226 = vrot.slane %v1710, %v2225
    %v2227 = vmul.f32 %v2222, %v2226
    %v2228 = vlaneseq
    %v2229 = vshrl.u32 %v2228, 7
    %v2230 = vsub.s32 2, %v2229
    %v2231 = vrot.slane %v1710, %v2230
    %v2232 = vadd.f32 %v2227, %v2231
    %v2233 = vmax.f32 %v2232, 0.0
    %2234 = vst.msk [vmem:[#allocation7] sm:$0xff] %vm81, %v2233
    // Predicated region
    $region34: #{tpu_custom_call.1} parent=1 // pred_check
      _
    $region35: #{tpu_custom_call.1} parent=1 // pred_check_branch
      %2236 = sbr.rel (0) target = $region37
    $region36: #{tpu_custom_call.1} parent=1 // pred_region
      %s2238 = ssub.s32 128, 128
      %2239 = vsyncadd [#allocation4], %s2238
      %s2241 = sshll.u32 [#allocation7], 4
      %s2242 = int_to_ptr.vmem [resolvable:$true] %s2241
      %2244 = dma.vmem_to_hbm [thread:$0]  %s2242, 128, %s6, [#allocation4]
    $region37: #{tpu_custom_call.1} parent=1 // pred_fallthru
      _
    // Predicated region
    $region38: #{tpu_custom_call.1} parent=1 // pred_check
      _
    $region39: #{tpu_custom_call.1} parent=1 // pred_check_branch
      %2246 = sbr.rel (0) target = $region41
    $region40: #{tpu_custom_call.1} parent=1 // pred_region
      %2247 = dma.done [#allocation4], 128
    $region41: #{tpu_custom_call.1} parent=1 // pred_fallthru
      _
    %2248 = vsyncpa [#allocation3], 1
    %2249 = vsyncpa [#allocation6], 1
    %2250 = vsyncpa [#allocation4], 1

</llo_original>
